<compile_context>
chip_gen: v7x
topology: tpu7x:2x2x1
jax: 0.10.0
libtpu: 0.0.40
codegen_flags: <defaults>
</compile_context>

<pallas_src>
import functools

import jax
import jax.numpy as jnp
from jax import lax
from jax.experimental import pallas as pl
from jax.experimental.pallas import tpu as pltpu

IN_FEATURES = 784
HIDDEN = 500
OUT_FEATURES = 10

# Lane/MXU aligned padded dims.
K_PAD = 896      # 784 -> 7 * 128
H_PAD = 512      # 500 -> 512
N_PAD = 128      # 10  -> one full lane width


def _round_up(x, m):
    return (x + m - 1) // m * m


def _net_fc_kernel(x_ref, w1_ref, b1_ref, w2_ref, b2_ref, out_ref):
    # x_ref : (TM, K_PAD)     bfloat16   (zero-padded cols >= 784 and rows >= B)
    # w1_ref: (K_PAD, H_PAD)  bfloat16   (zero-padded)
    # b1_ref: (1, H_PAD)      float32    (zero-padded)
    # w2_ref: (H_PAD, N_PAD)  bfloat16   (zero-padded)
    # b2_ref: (1, N_PAD)      float32    (zero-padded)
    # out   : (TM, N_PAD)     float32    (log-probs in cols < 10)
    x = x_ref[...]

    # fc1 + bias + ReLU: bf16 MXU inputs, f32 accumulation, f32 elementwise.
    h = jnp.dot(x, w1_ref[...], preferred_element_type=jnp.float32)
    h = jnp.maximum(h + b1_ref[...], jnp.float32(0.0))

    # fc2 (lane-dense 128-wide logits tile).
    logits = jnp.dot(h.astype(jnp.bfloat16), w2_ref[...],
                     preferred_element_type=jnp.float32) + b2_ref[...]

    # Mask padded columns (>= 10) so they do not perturb the log-softmax.
    col = lax.broadcasted_iota(jnp.int32, logits.shape, 1)
    logits = jnp.where(col < OUT_FEATURES, logits, -jnp.inf)

    # Numerically stable log_softmax over dim=1.
    m = jnp.max(logits, axis=-1, keepdims=True)
    shifted = logits - m
    lse = jnp.log(jnp.sum(jnp.exp(shifted), axis=-1, keepdims=True))
    out_ref[...] = (shifted - lse).astype(out_ref.dtype)


@functools.partial(jax.jit, static_argnames=())
def net_fc_forward(x, w1, b1, w2, b2):
    """x: (B, 1, 28, 28) or (B, 784). w1: (784, 500), w2: (500, 10).
    Returns (B, 10) log-probabilities (float32)."""
    x2d = x.reshape(-1, IN_FEATURES)
    B = x2d.shape[0]

    # Batch tile: 128-multiples (MXU rows on all gens); cap at 256 (v7x VMEM).
    TM = min(256, _round_up(max(B, 1), 128))
    B_pad = _round_up(B, TM)
    grid = (B_pad // TM,)

    # Zero-padded, lane-aligned operands. Matmul inputs in bf16.
    x_p = jnp.zeros((B_pad, K_PAD), jnp.bfloat16)
    x_p = x_p.at[:B, :IN_FEATURES].set(x2d.astype(jnp.bfloat16))
    w1_p = jnp.zeros((K_PAD, H_PAD), jnp.bfloat16)
    w1_p = w1_p.at[:IN_FEATURES, :HIDDEN].set(w1.astype(jnp.bfloat16))
    b1_p = jnp.zeros((1, H_PAD), jnp.float32)
    b1_p = b1_p.at[:, :HIDDEN].set(b1.reshape(1, HIDDEN).astype(jnp.float32))
    w2_p = jnp.zeros((H_PAD, N_PAD), jnp.bfloat16)
    w2_p = w2_p.at[:HIDDEN, :OUT_FEATURES].set(w2.astype(jnp.bfloat16))
    b2_p = jnp.zeros((1, N_PAD), jnp.float32)
    b2_p = b2_p.at[:, :OUT_FEATURES].set(b2.reshape(1, OUT_FEATURES).astype(jnp.float32))

    bytes_accessed = (
        x_p.size * 2 + w1_p.size * 2 + w2_p.size * 2      # bf16 inputs
        + b1_p.size * 4 + b2_p.size * 4                   # f32 biases
        + B_pad * N_PAD * 4                               # f32 output
    )
    cost = pl.CostEstimate(
        flops=2 * B_pad * (K_PAD * H_PAD + H_PAD * N_PAD),
        transcendentals=B_pad * N_PAD,                    # exp in log-softmax
        bytes_accessed=bytes_accessed,
    )

    out_padded = pl.pallas_call(
        _net_fc_kernel,
        out_shape=jax.ShapeDtypeStruct((B_pad, N_PAD), jnp.float32),
        grid=grid,
        in_specs=[
            pl.BlockSpec((TM, K_PAD), lambda i: (i, 0)),      # x: batch-tiled
            pl.BlockSpec((K_PAD, H_PAD), lambda i: (0, 0)),   # W1: resident
            pl.BlockSpec((1, H_PAD), lambda i: (0, 0)),       # b1: resident
            pl.BlockSpec((H_PAD, N_PAD), lambda i: (0, 0)),   # W2: resident
            pl.BlockSpec((1, N_PAD), lambda i: (0, 0)),       # b2: resident
        ],
        out_specs=pl.BlockSpec((TM, N_PAD), lambda i: (i, 0)),
        compiler_params=pltpu.CompilerParams(
            dimension_semantics=("parallel",),
        ),
        cost_estimate=cost,
    )(x_p, w1_p, b1_p, w2_p, b2_p)

    return out_padded[:B, :OUT_FEATURES]


def init_params(key):
    """Deterministic init mimicking nn.Linear's U(-1/sqrt(fan_in), 1/sqrt(fan_in)).
    Weights are stored as (in_features, out_features)."""
    k1, k2, k3, k4 = jax.random.split(key, 4)
    bound1 = 1.0 / jnp.sqrt(jnp.float32(IN_FEATURES))
    bound2 = 1.0 / jnp.sqrt(jnp.float32(HIDDEN))
    w1 = jax.random.uniform(k1, (IN_FEATURES, HIDDEN), jnp.float32, -bound1, bound1)
    b1 = jax.random.uniform(k2, (HIDDEN,), jnp.float32, -bound1, bound1)
    w2 = jax.random.uniform(k3, (HIDDEN, OUT_FEATURES), jnp.float32, -bound2, bound2)
    b2 = jax.random.uniform(k4, (OUT_FEATURES,), jnp.float32, -bound2, bound2)
    return w1, b1, w2, b2


def reference_forward_bf16(x, w1, b1, w2, b2):
    """Reference using the same bf16 rounding of matmul inputs, f32 math."""
    x2d = x.reshape(-1, IN_FEATURES).astype(jnp.bfloat16).astype(jnp.float32)
    w1f = w1.astype(jnp.bfloat16).astype(jnp.float32)
    w2f = w2.astype(jnp.bfloat16).astype(jnp.float32)
    h = jnp.maximum(x2d @ w1f + b1.astype(jnp.float32), 0.0)
    h_b = h.astype(jnp.bfloat16).astype(jnp.float32)
    logits = h_b @ w2f + b2.astype(jnp.float32)
    return jax.nn.log_softmax(logits, axis=1)


def reference_forward_f32(x, w1, b1, w2, b2):
    x2d = x.reshape(-1, IN_FEATURES).astype(jnp.float32)
    h = jnp.maximum(x2d @ w1 + b1, 0.0)
    logits = h @ w2 + b2
    return jax.nn.log_softmax(logits, axis=1)


if __name__ == "__main__":
    key = jax.random.PRNGKey(0)
    kx, kp = jax.random.split(key)

    # Small batch of FashionMNIST-shaped inputs (NCHW), flattened inside forward.
    x = jax.random.normal(kx, (2, 1, 28, 28), dtype=jnp.float32)
    w1, b1, w2, b2 = init_params(kp)

    out = net_fc_forward(x, w1, b1, w2, b2)
    out = jax.block_until_ready(out)

    assert out.shape == (2, OUT_FEATURES)

    # Exact-ish match vs. a reference with identical bf16 input rounding.
    ref_bf16 = reference_forward_bf16(x, w1, b1, w2, b2)
    assert jnp.allclose(out, ref_bf16, atol=2e-3, rtol=2e-3), "mismatch vs bf16 reference"

    # Loose match vs. full-f32 reference (bf16 matmul inputs -> small drift).
    ref_f32 = reference_forward_f32(x, w1, b1, w2, b2)
    assert jnp.allclose(out, ref_f32, atol=5e-2, rtol=5e-2), "mismatch vs f32 reference"

    # log-softmax rows should sum to ~1 in probability space.
    assert jnp.allclose(jnp.sum(jnp.exp(out), axis=1), 1.0, atol=1e-3)

    print("KERNEL_OK")
</pallas_src>

<mosaic_0001>
module attributes {stable_mosaic.version = 11 : i64} {
  func.func @_net_fc_kernel(%arg0: i32, %arg1: memref<128x896xbf16, #tpu.memory_space<vmem>>, %arg2: memref<896x512xbf16, #tpu.memory_space<vmem>>, %arg3: memref<1x512xf32, #tpu.memory_space<vmem>>, %arg4: memref<512x128xbf16, #tpu.memory_space<vmem>>, %arg5: memref<1x128xf32, #tpu.memory_space<vmem>>, %arg6: memref<128x128xf32, #tpu.memory_space<vmem>>) attributes {dimension_semantics = [#tpu.dimension_semantics<parallel>], iteration_bounds = array<i64: 1>, scalar_prefetch = 0 : i64, scratch_operands = 0 : i64, tpu.core_type = #tpu.core_type<tc>, window_params = [{transform_indices = @transform_0, window_bounds = array<i64: 128, 896>}, {pipeline_mode = #tpu.pipeline_mode<synchronous>, transform_indices = @transform_1, window_bounds = array<i64: 896, 512>}, {pipeline_mode = #tpu.pipeline_mode<synchronous>, transform_indices = @transform_2, window_bounds = array<i64: 1, 512>}, {pipeline_mode = #tpu.pipeline_mode<synchronous>, transform_indices = @transform_3, window_bounds = array<i64: 512, 128>}, {pipeline_mode = #tpu.pipeline_mode<synchronous>, transform_indices = @transform_4, window_bounds = array<i64: 1, 128>}, {transform_indices = @transform_5, window_bounds = array<i64: 128, 128>}]} {
    %c0 = arith.constant 0 : index
    %c0_0 = arith.constant 0 : index
    %0 = vector.load %arg1[%c0, %c0_0] : memref<128x896xbf16, #tpu.memory_space<vmem>>, vector<128x896xbf16>
    %c0_1 = arith.constant 0 : index
    %c0_2 = arith.constant 0 : index
    %1 = vector.load %arg2[%c0_1, %c0_2] : memref<896x512xbf16, #tpu.memory_space<vmem>>, vector<896x512xbf16>
    %cst = arith.constant dense<0.000000e+00> : vector<128x512xf32>
    %2 = tpu.matmul %0, %1, %cst {dimension_numbers = #tpu.dot_dimension_numbers<[1], [0], [0], [1], [0, 0, 1, 1], [], []>} : vector<128x896xbf16>, vector<896x512xbf16>, vector<128x512xf32> -> vector<128x512xf32>
    %c0_3 = arith.constant 0 : index
    %c0_4 = arith.constant 0 : index
    %3 = vector.load %arg3[%c0_3, %c0_4] : memref<1x512xf32, #tpu.memory_space<vmem>>, vector<1x512xf32>
    %4 = vector.broadcast %3 : vector<1x512xf32> to vector<128x512xf32>
    %5 = arith.addf %2, %4 : vector<128x512xf32>
    %cst_5 = arith.constant 0.000000e+00 : f32
    %6 = vector.broadcast %cst_5 : f32 to vector<128x512xf32>
    %7 = arith.maximumf %5, %6 : vector<128x512xf32>
    %8 = arith.truncf %7 : vector<128x512xf32> to vector<128x512xbf16>
    %c0_6 = arith.constant 0 : index
    %c0_7 = arith.constant 0 : index
    %9 = vector.load %arg4[%c0_6, %c0_7] : memref<512x128xbf16, #tpu.memory_space<vmem>>, vector<512x128xbf16>
    %cst_8 = arith.constant dense<0.000000e+00> : vector<128x128xf32>
    %10 = tpu.matmul %8, %9, %cst_8 {dimension_numbers = #tpu.dot_dimension_numbers<[1], [0], [0], [1], [0, 0, 1, 1], [], []>} : vector<128x512xbf16>, vector<512x128xbf16>, vector<128x128xf32> -> vector<128x128xf32>
    %c0_9 = arith.constant 0 : index
    %c0_10 = arith.constant 0 : index
    %11 = vector.load %arg5[%c0_9, %c0_10] : memref<1x128xf32, #tpu.memory_space<vmem>>, vector<1x128xf32>
    %12 = vector.broadcast %11 : vector<1x128xf32> to vector<128x128xf32>
    %13 = arith.addf %10, %12 : vector<128x128xf32>
    %14 = tpu.iota {dimensions = array<i32: 1>} : vector<128x128xi32>
    %c10_i32 = arith.constant 10 : i32
    %15 = vector.broadcast %c10_i32 : i32 to vector<128x128xi32>
    %16 = arith.cmpi slt, %14, %15 : vector<128x128xi32>
    %cst_11 = arith.constant 0xFF800000 : f32
    %17 = vector.broadcast %cst_11 : f32 to vector<128x128xf32>
    %18 = arith.select %16, %13, %17 : vector<128x128xi1>, vector<128x128xf32>
    %cst_12 = arith.constant dense<0xFF800000> : vector<128xf32>
    %19 = vector.multi_reduction <maximumf>, %18, %cst_12 [1] : vector<128x128xf32> to vector<128xf32>
    %20 = vector.shape_cast %19 : vector<128xf32> to vector<128x1xf32>
    %21 = vector.broadcast %20 : vector<128x1xf32> to vector<128x128xf32>
    %22 = arith.subf %18, %21 : vector<128x128xf32>
    %23 = math.exp %22 : vector<128x128xf32>
    %cst_13 = arith.constant dense<0.000000e+00> : vector<128xf32>
    %24 = vector.multi_reduction <add>, %23, %cst_13 [1] : vector<128x128xf32> to vector<128xf32>
    %25 = vector.shape_cast %24 : vector<128xf32> to vector<128x1xf32>
    %26 = math.log %25 : vector<128x1xf32>
    %27 = vector.broadcast %26 : vector<128x1xf32> to vector<128x128xf32>
    %28 = arith.subf %22, %27 : vector<128x128xf32>
    %c0_14 = arith.constant 0 : index
    %c0_15 = arith.constant 0 : index
    %29 = vector.load %arg6[%c0_14, %c0_15] : memref<128x128xf32, #tpu.memory_space<vmem>>, vector<128x128xf32>
    tpu.vector_store %arg6[%c0_14, %c0_15], %28 {strides = array<i32>} : memref<128x128xf32, #tpu.memory_space<vmem>>, vector<128x128xf32>,
    return
  }
  func.func @transform_0(%arg0: i32) -> (i32, i32) {
    %c0_i32 = arith.constant 0 : i32
    %c0_i32_0 = arith.constant 0 : i32
    return %arg0, %c0_i32 : i32, i32
  }
  func.func @transform_1(%arg0: i32) -> (i32, i32) {
    %c0_i32 = arith.constant 0 : i32
    %c0_i32_0 = arith.constant 0 : i32
    %c0_i32_1 = arith.constant 0 : i32
    return %c0_i32, %c0_i32_0 : i32, i32
  }
  func.func @transform_2(%arg0: i32) -> (i32, i32) {
    %c0_i32 = arith.constant 0 : i32
    %c0_i32_0 = arith.constant 0 : i32
    %c0_i32_1 = arith.constant 0 : i32
    return %c0_i32, %c0_i32_0 : i32, i32
  }
  func.func @transform_3(%arg0: i32) -> (i32, i32) {
    %c0_i32 = arith.constant 0 : i32
    %c0_i32_0 = arith.constant 0 : i32
    %c0_i32_1 = arith.constant 0 : i32
    return %c0_i32, %c0_i32_0 : i32, i32
  }
  func.func @transform_4(%arg0: i32) -> (i32, i32) {
    %c0_i32 = arith.constant 0 : i32
    %c0_i32_0 = arith.constant 0 : i32
    %c0_i32_1 = arith.constant 0 : i32
    return %c0_i32, %c0_i32_0 : i32, i32
  }
  func.func @transform_5(%arg0: i32) -> (i32, i32) {
    %c0_i32 = arith.constant 0 : i32
    %c0_i32_0 = arith.constant 0 : i32
    return %arg0, %c0_i32 : i32, i32
  }
}

</mosaic_0001>

<llo_original>
// kernel: net_fc_forward.1
$region0: #{net_fc_forward.1}
  #allocation0 [shape = 'u32[]', space=smem, size = 0x4, offset = 0x4, fixed_abs, tag = 'smem constant byte address 0x4 - core index']
  #allocation1 [shape = 'u32[144,128]{1,0:T(1,128)}', space=vmem, size = 0x12000, scoped, tag = 'internal scratch']
  %s0 = inlined_call_operand.vmem [shape: bf16[128,896], index: 0, kind: input, shape index: {}]
  %s1 = inlined_call_operand.vmem [shape: bf16[896,512], index: 1, kind: input, shape index: {}]
  %s2 = inlined_call_operand.vmem [shape: f32[1,512], index: 2, kind: input, shape index: {}]
  %s3 = inlined_call_operand.vmem [shape: bf16[512,128], index: 3, kind: input, shape index: {}]
  %s4 = inlined_call_operand.vmem [shape: f32[1,128], index: 4, kind: input, shape index: {}]
  %s5 = inlined_call_operand.vmem [shape: f32[128,128], index: 5, kind: output, shape index: {}]
  %s6 = sld [smem:[#allocation0]]
  $region30: #{net_fc_forward.1} parent=0
    _
  %s8 = ssub.s32 1, %s6
  %s9 = scalar_select 0, %s8, %s6
  // Predicated region
  $region2: #{net_fc_forward.1} parent=0 // pred_check
    _
  $region3: #{net_fc_forward.1} parent=0 // pred_check_branch
    %11 = sbr.rel (0) target = $region5
  $region4: #{net_fc_forward.1} parent=0 // pred_region
    _
  $region5: #{net_fc_forward.1} parent=0 // pred_fallthru
    _
  // Predicated region
  $region6: #{net_fc_forward.1} parent=0 // pred_check
    _
  $region7: #{net_fc_forward.1} parent=0 // pred_check_branch
    %13 = sbr.rel (0) target = $region9
  $region8: #{net_fc_forward.1} parent=0 // pred_region
    _
  $region9: #{net_fc_forward.1} parent=0 // pred_fallthru
    _
  // Predicated region
  $region10: #{net_fc_forward.1} parent=0 // pred_check
    _
  $region11: #{net_fc_forward.1} parent=0 // pred_check_branch
    %15 = sbr.rel (0) target = $region13
  $region12: #{net_fc_forward.1} parent=0 // pred_region
    _
  $region13: #{net_fc_forward.1} parent=0 // pred_fallthru
    _
  // Predicated region
  $region14: #{net_fc_forward.1} parent=0 // pred_check
    _
  $region15: #{net_fc_forward.1} parent=0 // pred_check_branch
    %17 = sbr.rel (0) target = $region17
  $region16: #{net_fc_forward.1} parent=0 // pred_region
    _
  $region17: #{net_fc_forward.1} parent=0 // pred_fallthru
    _
  // Predicated region
  $region18: #{net_fc_forward.1} parent=0 // pred_check
    _
  $region19: #{net_fc_forward.1} parent=0 // pred_check_branch
    %19 = sbr.rel (0) target = $region21
  $region20: #{net_fc_forward.1} parent=0 // pred_region
    _
  $region21: #{net_fc_forward.1} parent=0 // pred_fallthru
    _
  %v21 = vld [vmem:[%s0] sm:$0xff]
  %v22 = vld [vmem:[%s0 + $0x8] sm:$0xff]
  %v23 = vld [vmem:[%s0 + $0x10] sm:$0xff]
  %v24 = vld [vmem:[%s0 + $0x18] sm:$0xf]
  %v25 = vld [vmem:[%s0 + $0x1c] sm:$0xff]
  %v26 = vld [vmem:[%s0 + $0x24] sm:$0xff]
  %v27 = vld [vmem:[%s0 + $0x2c] sm:$0xff]
  %v28 = vld [vmem:[%s0 + $0x34] sm:$0xf]
  %v29 = vld [vmem:[%s0 + $0x38] sm:$0xff]
  %v30 = vld [vmem:[%s0 + $0x40] sm:$0xff]
  %v31 = vld [vmem:[%s0 + $0x48] sm:$0xff]
  %v32 = vld [vmem:[%s0 + $0x50] sm:$0xf]
  %v33 = vld [vmem:[%s0 + $0x54] sm:$0xff]
  %v34 = vld [vmem:[%s0 + $0x5c] sm:$0xff]
  %v35 = vld [vmem:[%s0 + $0x64] sm:$0xff]
  %v36 = vld [vmem:[%s0 + $0x6c] sm:$0xf]
  %v37 = vld [vmem:[%s0 + $0x70] sm:$0xff]
  %v38 = vld [vmem:[%s0 + $0x78] sm:$0xff]
  %v39 = vld [vmem:[%s0 + $0x80] sm:$0xff]
  %v40 = vld [vmem:[%s0 + $0x88] sm:$0xf]
  %v41 = vld [vmem:[%s0 + $0x8c] sm:$0xff]
  %v42 = vld [vmem:[%s0 + $0x94] sm:$0xff]
  %v43 = vld [vmem:[%s0 + $0x9c] sm:$0xff]
  %v44 = vld [vmem:[%s0 + $0xa4] sm:$0xf]
  %v45 = vld [vmem:[%s0 + $0xa8] sm:$0xff]
  %v46 = vld [vmem:[%s0 + $0xb0] sm:$0xff]
  %v47 = vld [vmem:[%s0 + $0xb8] sm:$0xff]
  %v48 = vld [vmem:[%s0 + $0xc0] sm:$0xf]
  %v49 = vld [vmem:[%s0 + $0xc4] sm:$0xff]
  %v50 = vld [vmem:[%s0 + $0xcc] sm:$0xff]
  %v51 = vld [vmem:[%s0 + $0xd4] sm:$0xff]
  %v52 = vld [vmem:[%s0 + $0xdc] sm:$0xf]
  %v53 = vld [vmem:[%s0 + $0xe0] sm:$0xff]
  %v54 = vld [vmem:[%s0 + $0xe8] sm:$0xff]
  %v55 = vld [vmem:[%s0 + $0xf0] sm:$0xff]
  %v56 = vld [vmem:[%s0 + $0xf8] sm:$0xf]
  %v57 = vld [vmem:[%s0 + $0xfc] sm:$0xff]
  %v58 = vld [vmem:[%s0 + $0x104] sm:$0xff]
  %v59 = vld [vmem:[%s0 + $0x10c] sm:$0xff]
  %v60 = vld [vmem:[%s0 + $0x114] sm:$0xf]
  %v61 = vld [vmem:[%s0 + $0x118] sm:$0xff]
  %v62 = vld [vmem:[%s0 + $0x120] sm:$0xff]
  %v63 = vld [vmem:[%s0 + $0x128] sm:$0xff]
  %v64 = vld [vmem:[%s0 + $0x130] sm:$0xf]
  %v65 = vld [vmem:[%s0 + $0x134] sm:$0xff]
  %v66 = vld [vmem:[%s0 + $0x13c] sm:$0xff]
  %v67 = vld [vmem:[%s0 + $0x144] sm:$0xff]
  %v68 = vld [vmem:[%s0 + $0x14c] sm:$0xf]
  %v69 = vld [vmem:[%s0 + $0x150] sm:$0xff]
  %v70 = vld [vmem:[%s0 + $0x158] sm:$0xff]
  %v71 = vld [vmem:[%s0 + $0x160] sm:$0xff]
  %v72 = vld [vmem:[%s0 + $0x168] sm:$0xf]
  %v73 = vld [vmem:[%s0 + $0x16c] sm:$0xff]
  %v74 = vld [vmem:[%s0 + $0x174] sm:$0xff]
  %v75 = vld [vmem:[%s0 + $0x17c] sm:$0xff]
  %v76 = vld [vmem:[%s0 + $0x184] sm:$0xf]
  %v77 = vld [vmem:[%s0 + $0x188] sm:$0xff]
  %v78 = vld [vmem:[%s0 + $0x190] sm:$0xff]
  %v79 = vld [vmem:[%s0 + $0x198] sm:$0xff]
  %v80 = vld [vmem:[%s0 + $0x1a0] sm:$0xf]
  %v81 = vld [vmem:[%s0 + $0x1a4] sm:$0xff]
  %v82 = vld [vmem:[%s0 + $0x1ac] sm:$0xff]
  %v83 = vld [vmem:[%s0 + $0x1b4] sm:$0xff]
  %v84 = vld [vmem:[%s0 + $0x1bc] sm:$0xf]
  %v85 = vld [vmem:[%s1] sm:$0xff]
  %v86 = vld [vmem:[%s1 + $0x8] sm:$0xff]
  %v87 = vld [vmem:[%s1 + $0x10] sm:$0xff]
  %v88 = vld [vmem:[%s1 + $0x18] sm:$0xff]
  %v89 = vld [vmem:[%s1 + $0x20] sm:$0xff]
  %v90 = vld [vmem:[%s1 + $0x28] sm:$0xff]
  %v91 = vld [vmem:[%s1 + $0x30] sm:$0xff]
  %v92 = vld [vmem:[%s1 + $0x38] sm:$0xff]
  %v93 = vld [vmem:[%s1 + $0x40] sm:$0xff]
  %v94 = vld [vmem:[%s1 + $0x48] sm:$0xff]
  %v95 = vld [vmem:[%s1 + $0x50] sm:$0xff]
  %v96 = vld [vmem:[%s1 + $0x58] sm:$0xff]
  %v97 = vld [vmem:[%s1 + $0x60] sm:$0xff]
  %v98 = vld [vmem:[%s1 + $0x68] sm:$0xff]
  %v99 = vld [vmem:[%s1 + $0x70] sm:$0xff]
  %v100 = vld [vmem:[%s1 + $0x78] sm:$0xff]
  %v101 = vld [vmem:[%s1 + $0x80] sm:$0xff]
  %v102 = vld [vmem:[%s1 + $0x88] sm:$0xff]
  %v103 = vld [vmem:[%s1 + $0x90] sm:$0xff]
  %v104 = vld [vmem:[%s1 + $0x98] sm:$0xff]
  %v105 = vld [vmem:[%s1 + $0xa0] sm:$0xff]
  %v106 = vld [vmem:[%s1 + $0xa8] sm:$0xff]
  %v107 = vld [vmem:[%s1 + $0xb0] sm:$0xff]
  %v108 = vld [vmem:[%s1 + $0xb8] sm:$0xff]
  %v109 = vld [vmem:[%s1 + $0xc0] sm:$0xff]
  %v110 = vld [vmem:[%s1 + $0xc8] sm:$0xff]
  %v111 = vld [vmem:[%s1 + $0xd0] sm:$0xff]
  %v112 = vld [vmem:[%s1 + $0xd8] sm:$0xff]
  %v113 = vld [vmem:[%s1 + $0xe0] sm:$0xff]
  %v114 = vld [vmem:[%s1 + $0xe8] sm:$0xff]
  %v115 = vld [vmem:[%s1 + $0xf0] sm:$0xff]
  %v116 = vld [vmem:[%s1 + $0xf8] sm:$0xff]
  %v117 = vld [vmem:[%s1 + $0x100] sm:$0xff]
  %v118 = vld [vmem:[%s1 + $0x108] sm:$0xff]
  %v119 = vld [vmem:[%s1 + $0x110] sm:$0xff]
  %v120 = vld [vmem:[%s1 + $0x118] sm:$0xff]
  %v121 = vld [vmem:[%s1 + $0x120] sm:$0xff]
  %v122 = vld [vmem:[%s1 + $0x128] sm:$0xff]
  %v123 = vld [vmem:[%s1 + $0x130] sm:$0xff]
  %v124 = vld [vmem:[%s1 + $0x138] sm:$0xff]
  %v125 = vld [vmem:[%s1 + $0x140] sm:$0xff]
  %v126 = vld [vmem:[%s1 + $0x148] sm:$0xff]
  %v127 = vld [vmem:[%s1 + $0x150] sm:$0xff]
  %v128 = vld [vmem:[%s1 + $0x158] sm:$0xff]
  %v129 = vld [vmem:[%s1 + $0x160] sm:$0xff]
  %v130 = vld [vmem:[%s1 + $0x168] sm:$0xff]
  %v131 = vld [vmem:[%s1 + $0x170] sm:$0xff]
  %v132 = vld [vmem:[%s1 + $0x178] sm:$0xff]
  %v133 = vld [vmem:[%s1 + $0x180] sm:$0xff]
  %v134 = vld [vmem:[%s1 + $0x188] sm:$0xff]
  %v135 = vld [vmem:[%s1 + $0x190] sm:$0xff]
  %v136 = vld [vmem:[%s1 + $0x198] sm:$0xff]
  %v137 = vld [vmem:[%s1 + $0x1a0] sm:$0xff]
  %v138 = vld [vmem:[%s1 + $0x1a8] sm:$0xff]
  %v139 = vld [vmem:[%s1 + $0x1b0] sm:$0xff]
  %v140 = vld [vmem:[%s1 + $0x1b8] sm:$0xff]
  %v141 = vld [vmem:[%s1 + $0x1c0] sm:$0xff]
  %v142 = vld [vmem:[%s1 + $0x1c8] sm:$0xff]
  %v143 = vld [vmem:[%s1 + $0x1d0] sm:$0xff]
  %v144 = vld [vmem:[%s1 + $0x1d8] sm:$0xff]
  %v145 = vld [vmem:[%s1 + $0x1e0] sm:$0xff]
  %v146 = vld [vmem:[%s1 + $0x1e8] sm:$0xff]
  %v147 = vld [vmem:[%s1 + $0x1f0] sm:$0xff]
  %v148 = vld [vmem:[%s1 + $0x1f8] sm:$0xff]
  %v149 = vld [vmem:[%s1 + $0x200] sm:$0xff]
  %v150 = vld [vmem:[%s1 + $0x208] sm:$0xff]
  %v151 = vld [vmem:[%s1 + $0x210] sm:$0xff]
  %v152 = vld [vmem:[%s1 + $0x218] sm:$0xff]
  %v153 = vld [vmem:[%s1 + $0x220] sm:$0xff]
  %v154 = vld [vmem:[%s1 + $0x228] sm:$0xff]
  %v155 = vld [vmem:[%s1 + $0x230] sm:$0xff]
  %v156 = vld [vmem:[%s1 + $0x238] sm:$0xff]
  %v157 = vld [vmem:[%s1 + $0x240] sm:$0xff]
  %v158 = vld [vmem:[%s1 + $0x248] sm:$0xff]
  %v159 = vld [vmem:[%s1 + $0x250] sm:$0xff]
  %v160 = vld [vmem:[%s1 + $0x258] sm:$0xff]
  %v161 = vld [vmem:[%s1 + $0x260] sm:$0xff]
  %v162 = vld [vmem:[%s1 + $0x268] sm:$0xff]
  %v163 = vld [vmem:[%s1 + $0x270] sm:$0xff]
  %v164 = vld [vmem:[%s1 + $0x278] sm:$0xff]
  %v165 = vld [vmem:[%s1 + $0x280] sm:$0xff]
  %v166 = vld [vmem:[%s1 + $0x288] sm:$0xff]
  %v167 = vld [vmem:[%s1 + $0x290] sm:$0xff]
  %v168 = vld [vmem:[%s1 + $0x298] sm:$0xff]
  %v169 = vld [vmem:[%s1 + $0x2a0] sm:$0xff]
  %v170 = vld [vmem:[%s1 + $0x2a8] sm:$0xff]
  %v171 = vld [vmem:[%s1 + $0x2b0] sm:$0xff]
  %v172 = vld [vmem:[%s1 + $0x2b8] sm:$0xff]
  %v173 = vld [vmem:[%s1 + $0x2c0] sm:$0xff]
  %v174 = vld [vmem:[%s1 + $0x2c8] sm:$0xff]
  %v175 = vld [vmem:[%s1 + $0x2d0] sm:$0xff]
  %v176 = vld [vmem:[%s1 + $0x2d8] sm:$0xff]
  %v177 = vld [vmem:[%s1 + $0x2e0] sm:$0xff]
  %v178 = vld [vmem:[%s1 + $0x2e8] sm:$0xff]
  %v179 = vld [vmem:[%s1 + $0x2f0] sm:$0xff]
  %v180 = vld [vmem:[%s1 + $0x2f8] sm:$0xff]
  %v181 = vld [vmem:[%s1 + $0x300] sm:$0xff]
  %v182 = vld [vmem:[%s1 + $0x308] sm:$0xff]
  %v183 = vld [vmem:[%s1 + $0x310] sm:$0xff]
  %v184 = vld [vmem:[%s1 + $0x318] sm:$0xff]
  %v185 = vld [vmem:[%s1 + $0x320] sm:$0xff]
  %v186 = vld [vmem:[%s1 + $0x328] sm:$0xff]
  %v187 = vld [vmem:[%s1 + $0x330] sm:$0xff]
  %v188 = vld [vmem:[%s1 + $0x338] sm:$0xff]
  %v189 = vld [vmem:[%s1 + $0x340] sm:$0xff]
  %v190 = vld [vmem:[%s1 + $0x348] sm:$0xff]
  %v191 = vld [vmem:[%s1 + $0x350] sm:$0xff]
  %v192 = vld [vmem:[%s1 + $0x358] sm:$0xff]
  %v193 = vld [vmem:[%s1 + $0x360] sm:$0xff]
  %v194 = vld [vmem:[%s1 + $0x368] sm:$0xff]
  %v195 = vld [vmem:[%s1 + $0x370] sm:$0xff]
  %v196 = vld [vmem:[%s1 + $0x378] sm:$0xff]
  %v197 = vld [vmem:[%s1 + $0x380] sm:$0xff]
  %v198 = vld [vmem:[%s1 + $0x388] sm:$0xff]
  %v199 = vld [vmem:[%s1 + $0x390] sm:$0xff]
  %v200 = vld [vmem:[%s1 + $0x398] sm:$0xff]
  %v201 = vld [vmem:[%s1 + $0x3a0] sm:$0xff]
  %v202 = vld [vmem:[%s1 + $0x3a8] sm:$0xff]
  %v203 = vld [vmem:[%s1 + $0x3b0] sm:$0xff]
  %v204 = vld [vmem:[%s1 + $0x3b8] sm:$0xff]
  %v205 = vld [vmem:[%s1 + $0x3c0] sm:$0xff]
  %v206 = vld [vmem:[%s1 + $0x3c8] sm:$0xff]
  %v207 = vld [vmem:[%s1 + $0x3d0] sm:$0xff]
  %v208 = vld [vmem:[%s1 + $0x3d8] sm:$0xff]
  %v209 = vld [vmem:[%s1 + $0x3e0] sm:$0xff]
  %v210 = vld [vmem:[%s1 + $0x3e8] sm:$0xff]
  %v211 = vld [vmem:[%s1 + $0x3f0] sm:$0xff]
  %v212 = vld [vmem:[%s1 + $0x3f8] sm:$0xff]
  %v213 = vld [vmem:[%s1 + $0x400] sm:$0xff]
  %v214 = vld [vmem:[%s1 + $0x408] sm:$0xff]
  %v215 = vld [vmem:[%s1 + $0x410] sm:$0xff]
  %v216 = vld [vmem:[%s1 + $0x418] sm:$0xff]
  %v217 = vld [vmem:[%s1 + $0x420] sm:$0xff]
  %v218 = vld [vmem:[%s1 + $0x428] sm:$0xff]
  %v219 = vld [vmem:[%s1 + $0x430] sm:$0xff]
  %v220 = vld [vmem:[%s1 + $0x438] sm:$0xff]
  %v221 = vld [vmem:[%s1 + $0x440] sm:$0xff]
  %v222 = vld [vmem:[%s1 + $0x448] sm:$0xff]
  %v223 = vld [vmem:[%s1 + $0x450] sm:$0xff]
  %v224 = vld [vmem:[%s1 + $0x458] sm:$0xff]
  %v225 = vld [vmem:[%s1 + $0x460] sm:$0xff]
  %v226 = vld [vmem:[%s1 + $0x468] sm:$0xff]
  %v227 = vld [vmem:[%s1 + $0x470] sm:$0xff]
  %v228 = vld [vmem:[%s1 + $0x478] sm:$0xff]
  %v229 = vld [vmem:[%s1 + $0x480] sm:$0xff]
  %v230 = vld [vmem:[%s1 + $0x488] sm:$0xff]
  %v231 = vld [vmem:[%s1 + $0x490] sm:$0xff]
  %v232 = vld [vmem:[%s1 + $0x498] sm:$0xff]
  %v233 = vld [vmem:[%s1 + $0x4a0] sm:$0xff]
  %v234 = vld [vmem:[%s1 + $0x4a8] sm:$0xff]
  %v235 = vld [vmem:[%s1 + $0x4b0] sm:$0xff]
  %v236 = vld [vmem:[%s1 + $0x4b8] sm:$0xff]
  %v237 = vld [vmem:[%s1 + $0x4c0] sm:$0xff]
  %v238 = vld [vmem:[%s1 + $0x4c8] sm:$0xff]
  %v239 = vld [vmem:[%s1 + $0x4d0] sm:$0xff]
  %v240 = vld [vmem:[%s1 + $0x4d8] sm:$0xff]
  %v241 = vld [vmem:[%s1 + $0x4e0] sm:$0xff]
  %v242 = vld [vmem:[%s1 + $0x4e8] sm:$0xff]
  %v243 = vld [vmem:[%s1 + $0x4f0] sm:$0xff]
  %v244 = vld [vmem:[%s1 + $0x4f8] sm:$0xff]
  %v245 = vld [vmem:[%s1 + $0x500] sm:$0xff]
  %v246 = vld [vmem:[%s1 + $0x508] sm:$0xff]
  %v247 = vld [vmem:[%s1 + $0x510] sm:$0xff]
  %v248 = vld [vmem:[%s1 + $0x518] sm:$0xff]
  %v249 = vld [vmem:[%s1 + $0x520] sm:$0xff]
  %v250 = vld [vmem:[%s1 + $0x528] sm:$0xff]
  %v251 = vld [vmem:[%s1 + $0x530] sm:$0xff]
  %v252 = vld [vmem:[%s1 + $0x538] sm:$0xff]
  %v253 = vld [vmem:[%s1 + $0x540] sm:$0xff]
  %v254 = vld [vmem:[%s1 + $0x548] sm:$0xff]
  %v255 = vld [vmem:[%s1 + $0x550] sm:$0xff]
  %v256 = vld [vmem:[%s1 + $0x558] sm:$0xff]
  %v257 = vld [vmem:[%s1 + $0x560] sm:$0xff]
  %v258 = vld [vmem:[%s1 + $0x568] sm:$0xff]
  %v259 = vld [vmem:[%s1 + $0x570] sm:$0xff]
  %v260 = vld [vmem:[%s1 + $0x578] sm:$0xff]
  %v261 = vld [vmem:[%s1 + $0x580] sm:$0xff]
  %v262 = vld [vmem:[%s1 + $0x588] sm:$0xff]
  %v263 = vld [vmem:[%s1 + $0x590] sm:$0xff]
  %v264 = vld [vmem:[%s1 + $0x598] sm:$0xff]
  %v265 = vld [vmem:[%s1 + $0x5a0] sm:$0xff]
  %v266 = vld [vmem:[%s1 + $0x5a8] sm:$0xff]
  %v267 = vld [vmem:[%s1 + $0x5b0] sm:$0xff]
  %v268 = vld [vmem:[%s1 + $0x5b8] sm:$0xff]
  %v269 = vld [vmem:[%s1 + $0x5c0] sm:$0xff]
  %v270 = vld [vmem:[%s1 + $0x5c8] sm:$0xff]
  %v271 = vld [vmem:[%s1 + $0x5d0] sm:$0xff]
  %v272 = vld [vmem:[%s1 + $0x5d8] sm:$0xff]
  %v273 = vld [vmem:[%s1 + $0x5e0] sm:$0xff]
  %v274 = vld [vmem:[%s1 + $0x5e8] sm:$0xff]
  %v275 = vld [vmem:[%s1 + $0x5f0] sm:$0xff]
  %v276 = vld [vmem:[%s1 + $0x5f8] sm:$0xff]
  %v277 = vld [vmem:[%s1 + $0x600] sm:$0xff]
  %v278 = vld [vmem:[%s1 + $0x608] sm:$0xff]
  %v279 = vld [vmem:[%s1 + $0x610] sm:$0xff]
  %v280 = vld [vmem:[%s1 + $0x618] sm:$0xff]
  %v281 = vld [vmem:[%s1 + $0x620] sm:$0xff]
  %v282 = vld [vmem:[%s1 + $0x628] sm:$0xff]
  %v283 = vld [vmem:[%s1 + $0x630] sm:$0xff]
  %v284 = vld [vmem:[%s1 + $0x638] sm:$0xff]
  %v285 = vld [vmem:[%s1 + $0x640] sm:$0xff]
  %v286 = vld [vmem:[%s1 + $0x648] sm:$0xff]
  %v287 = vld [vmem:[%s1 + $0x650] sm:$0xff]
  %v288 = vld [vmem:[%s1 + $0x658] sm:$0xff]
  %v289 = vld [vmem:[%s1 + $0x660] sm:$0xff]
  %v290 = vld [vmem:[%s1 + $0x668] sm:$0xff]
  %v291 = vld [vmem:[%s1 + $0x670] sm:$0xff]
  %v292 = vld [vmem:[%s1 + $0x678] sm:$0xff]
  %v293 = vld [vmem:[%s1 + $0x680] sm:$0xff]
  %v294 = vld [vmem:[%s1 + $0x688] sm:$0xff]
  %v295 = vld [vmem:[%s1 + $0x690] sm:$0xff]
  %v296 = vld [vmem:[%s1 + $0x698] sm:$0xff]
  %v297 = vld [vmem:[%s1 + $0x6a0] sm:$0xff]
  %v298 = vld [vmem:[%s1 + $0x6a8] sm:$0xff]
  %v299 = vld [vmem:[%s1 + $0x6b0] sm:$0xff]
  %v300 = vld [vmem:[%s1 + $0x6b8] sm:$0xff]
  %v301 = vld [vmem:[%s1 + $0x6c0] sm:$0xff]
  %v302 = vld [vmem:[%s1 + $0x6c8] sm:$0xff]
  %v303 = vld [vmem:[%s1 + $0x6d0] sm:$0xff]
  %v304 = vld [vmem:[%s1 + $0x6d8] sm:$0xff]
  %v305 = vld [vmem:[%s1 + $0x6e0] sm:$0xff]
  %v306 = vld [vmem:[%s1 + $0x6e8] sm:$0xff]
  %v307 = vld [vmem:[%s1 + $0x6f0] sm:$0xff]
  %v308 = vld [vmem:[%s1 + $0x6f8] sm:$0xff]
  %v309 = vld [vmem:[%s2] sm:$0xf]
  %v311 = vlaneseq
  %v312 = vshrl.u32 %v311, 7
  %v313 = vsub.s32 0, %v312
  %v314 = vrot.slane %v309, %v313
  %v315 = vlaneseq
  %v316 = vshrl.u32 %v315, 7
  %v317 = vsub.s32 1, %v316
  %v318 = vrot.slane %v309, %v317
  %v319 = vlaneseq
  %v320 = vshrl.u32 %v319, 7
  %v321 = vsub.s32 2, %v320
  %v322 = vrot.slane %v309, %v321
  %v323 = vlaneseq
  %v324 = vshrl.u32 %v323, 7
  %v325 = vsub.s32 3, %v324
  %v326 = vrot.slane %v309, %v325
  %v395 = vunpack.c.l.b16 %v21
  %v396 = vunpack.c.h.b16 %v21
  %v397 = vunpack.c.l.b16 %v22
  %v398 = vunpack.c.h.b16 %v22
  %v399 = vunpack.c.l.b16 %v23
  %v400 = vunpack.c.h.b16 %v23
  %v401 = vunpack.c.l.b16 %v24
  %v402 = vunpack.c.l.b16 %v25
  %v403 = vunpack.c.h.b16 %v25
  %v404 = vunpack.c.l.b16 %v26
  %v405 = vunpack.c.h.b16 %v26
  %v406 = vunpack.c.l.b16 %v27
  %v407 = vunpack.c.h.b16 %v27
  %v408 = vunpack.c.l.b16 %v28
  %v409 = vunpack.c.l.b16 %v29
  %v410 = vunpack.c.h.b16 %v29
  %v411 = vunpack.c.l.b16 %v30
  %v412 = vunpack.c.h.b16 %v30
  %v413 = vunpack.c.l.b16 %v31
  %v414 = vunpack.c.h.b16 %v31
  %v415 = vunpack.c.l.b16 %v32
  %v416 = vunpack.c.l.b16 %v33
  %v417 = vunpack.c.h.b16 %v33
  %v418 = vunpack.c.l.b16 %v34
  %v419 = vunpack.c.h.b16 %v34
  %v420 = vunpack.c.l.b16 %v35
  %v421 = vunpack.c.h.b16 %v35
  %v422 = vunpack.c.l.b16 %v36
  %v423 = vunpack.c.l.b16 %v37
  %v424 = vunpack.c.h.b16 %v37
  %v425 = vunpack.c.l.b16 %v38
  %v426 = vunpack.c.h.b16 %v38
  %v427 = vunpack.c.l.b16 %v39
  %v428 = vunpack.c.h.b16 %v39
  %v429 = vunpack.c.l.b16 %v40
  %v430 = vunpack.c.l.b16 %v41
  %v431 = vunpack.c.h.b16 %v41
  %v432 = vunpack.c.l.b16 %v42
  %v433 = vunpack.c.h.b16 %v42
  %v434 = vunpack.c.l.b16 %v43
  %v435 = vunpack.c.h.b16 %v43
  %v436 = vunpack.c.l.b16 %v44
  %v437 = vunpack.c.l.b16 %v45
  %v438 = vunpack.c.h.b16 %v45
  %v439 = vunpack.c.l.b16 %v46
  %v440 = vunpack.c.h.b16 %v46
  %v441 = vunpack.c.l.b16 %v47
  %v442 = vunpack.c.h.b16 %v47
  %v443 = vunpack.c.l.b16 %v48
  %v444 = vunpack.c.l.b16 %v49
  %v445 = vunpack.c.h.b16 %v49
  %v446 = vunpack.c.l.b16 %v50
  %v447 = vunpack.c.h.b16 %v50
  %v448 = vunpack.c.l.b16 %v51
  %v449 = vunpack.c.h.b16 %v51
  %v450 = vunpack.c.l.b16 %v52
  %v451 = vunpack.c.l.b16 %v53
  %v452 = vunpack.c.h.b16 %v53
  %v453 = vunpack.c.l.b16 %v54
  %v454 = vunpack.c.h.b16 %v54
  %v455 = vunpack.c.l.b16 %v55
  %v456 = vunpack.c.h.b16 %v55
  %v457 = vunpack.c.l.b16 %v56
  %v458 = vunpack.c.l.b16 %v57
  %v459 = vunpack.c.h.b16 %v57
  %v460 = vunpack.c.l.b16 %v58
  %v461 = vunpack.c.h.b16 %v58
  %v462 = vunpack.c.l.b16 %v59
  %v463 = vunpack.c.h.b16 %v59
  %v464 = vunpack.c.l.b16 %v60
  %v465 = vunpack.c.l.b16 %v61
  %v466 = vunpack.c.h.b16 %v61
  %v467 = vunpack.c.l.b16 %v62
  %v468 = vunpack.c.h.b16 %v62
  %v469 = vunpack.c.l.b16 %v63
  %v470 = vunpack.c.h.b16 %v63
  %v471 = vunpack.c.l.b16 %v64
  %v472 = vunpack.c.l.b16 %v65
  %v473 = vunpack.c.h.b16 %v65
  %v474 = vunpack.c.l.b16 %v66
  %v475 = vunpack.c.h.b16 %v66
  %v476 = vunpack.c.l.b16 %v67
  %v477 = vunpack.c.h.b16 %v67
  %v478 = vunpack.c.l.b16 %v68
  %v479 = vunpack.c.l.b16 %v69
  %v480 = vunpack.c.h.b16 %v69
  %v481 = vunpack.c.l.b16 %v70
  %v482 = vunpack.c.h.b16 %v70
  %v483 = vunpack.c.l.b16 %v71
  %v484 = vunpack.c.h.b16 %v71
  %v485 = vunpack.c.l.b16 %v72
  %v486 = vunpack.c.l.b16 %v73
  %v487 = vunpack.c.h.b16 %v73
  %v488 = vunpack.c.l.b16 %v74
  %v489 = vunpack.c.h.b16 %v74
  %v490 = vunpack.c.l.b16 %v75
  %v491 = vunpack.c.h.b16 %v75
  %v492 = vunpack.c.l.b16 %v76
  %v493 = vunpack.c.l.b16 %v77
  %v494 = vunpack.c.h.b16 %v77
  %v495 = vunpack.c.l.b16 %v78
  %v496 = vunpack.c.h.b16 %v78
  %v497 = vunpack.c.l.b16 %v79
  %v498 = vunpack.c.h.b16 %v79
  %v499 = vunpack.c.l.b16 %v80
  %v500 = vunpack.c.l.b16 %v81
  %v501 = vunpack.c.h.b16 %v81
  %v502 = vunpack.c.l.b16 %v82
  %v503 = vunpack.c.h.b16 %v82
  %v504 = vunpack.c.l.b16 %v83
  %v505 = vunpack.c.h.b16 %v83
  %v506 = vunpack.c.l.b16 %v84
  %v507 = vpack.c.b16 %v402, %v395
  %v508 = vpack.c.b16 %v403, %v396
  %v509 = vpack.c.b16 %v404, %v397
  %v510 = vpack.c.b16 %v405, %v398
  %v511 = vpack.c.b16 %v406, %v399
  %v512 = vpack.c.b16 %v407, %v400
  %v513 = vpack.c.b16 %v408, %v401
  %v514 = vpack.c.b16 %v416, %v409
  %v515 = vpack.c.b16 %v417, %v410
  %v516 = vpack.c.b16 %v418, %v411
  %v517 = vpack.c.b16 %v419, %v412
  %v518 = vpack.c.b16 %v420, %v413
  %v519 = vpack.c.b16 %v421, %v414
  %v520 = vpack.c.b16 %v422, %v415
  %v521 = vpack.c.b16 %v430, %v423
  %v522 = vpack.c.b16 %v431, %v424
  %v523 = vpack.c.b16 %v432, %v425
  %v524 = vpack.c.b16 %v433, %v426
  %v525 = vpack.c.b16 %v434, %v427
  %v526 = vpack.c.b16 %v435, %v428
  %v527 = vpack.c.b16 %v436, %v429
  %v528 = vpack.c.b16 %v444, %v437
  %v529 = vpack.c.b16 %v445, %v438
  %v530 = vpack.c.b16 %v446, %v439
  %v531 = vpack.c.b16 %v447, %v440
  %v532 = vpack.c.b16 %v448, %v441
  %v533 = vpack.c.b16 %v449, %v442
  %v534 = vpack.c.b16 %v450, %v443
  %v535 = vpack.c.b16 %v458, %v451
  %v536 = vpack.c.b16 %v459, %v452
  %v537 = vpack.c.b16 %v460, %v453
  %v538 = vpack.c.b16 %v461, %v454
  %v539 = vpack.c.b16 %v462, %v455
  %v540 = vpack.c.b16 %v463, %v456
  %v541 = vpack.c.b16 %v464, %v457
  %v542 = vpack.c.b16 %v472, %v465
  %v543 = vpack.c.b16 %v473, %v466
  %v544 = vpack.c.b16 %v474, %v467
  %v545 = vpack.c.b16 %v475, %v468
  %v546 = vpack.c.b16 %v476, %v469
  %v547 = vpack.c.b16 %v477, %v470
  %v548 = vpack.c.b16 %v478, %v471
  %v549 = vpack.c.b16 %v486, %v479
  %v550 = vpack.c.b16 %v487, %v480
  %v551 = vpack.c.b16 %v488, %v481
  %v552 = vpack.c.b16 %v489, %v482
  %v553 = vpack.c.b16 %v490, %v483
  %v554 = vpack.c.b16 %v491, %v484
  %v555 = vpack.c.b16 %v492, %v485
  %v556 = vpack.c.b16 %v500, %v493
  %v557 = vpack.c.b16 %v501, %v494
  %v558 = vpack.c.b16 %v502, %v495
  %v559 = vpack.c.b16 %v503, %v496
  %v560 = vpack.c.b16 %v504, %v497
  %v561 = vpack.c.b16 %v505, %v498
  %v562 = vpack.c.b16 %v506, %v499
  %v843 = vunpack.c.l.b16 %v85
  %v844 = vunpack.c.h.b16 %v85
  %v845 = vunpack.c.l.b16 %v86
  %v846 = vunpack.c.h.b16 %v86
  %v847 = vunpack.c.l.b16 %v87
  %v848 = vunpack.c.h.b16 %v87
  %v849 = vunpack.c.l.b16 %v88
  %v850 = vunpack.c.h.b16 %v88
  %v851 = vunpack.c.l.b16 %v89
  %v852 = vunpack.c.h.b16 %v89
  %v853 = vunpack.c.l.b16 %v90
  %v854 = vunpack.c.h.b16 %v90
  %v855 = vunpack.c.l.b16 %v91
  %v856 = vunpack.c.h.b16 %v91
  %v857 = vunpack.c.l.b16 %v92
  %v858 = vunpack.c.h.b16 %v92
  %v859 = vunpack.c.l.b16 %v93
  %v860 = vunpack.c.h.b16 %v93
  %v861 = vunpack.c.l.b16 %v94
  %v862 = vunpack.c.h.b16 %v94
  %v863 = vunpack.c.l.b16 %v95
  %v864 = vunpack.c.h.b16 %v95
  %v865 = vunpack.c.l.b16 %v96
  %v866 = vunpack.c.h.b16 %v96
  %v867 = vunpack.c.l.b16 %v97
  %v868 = vunpack.c.h.b16 %v97
  %v869 = vunpack.c.l.b16 %v98
  %v870 = vunpack.c.h.b16 %v98
  %v871 = vunpack.c.l.b16 %v99
  %v872 = vunpack.c.h.b16 %v99
  %v873 = vunpack.c.l.b16 %v100
  %v874 = vunpack.c.h.b16 %v100
  %v875 = vunpack.c.l.b16 %v101
  %v876 = vunpack.c.h.b16 %v101
  %v877 = vunpack.c.l.b16 %v102
  %v878 = vunpack.c.h.b16 %v102
  %v879 = vunpack.c.l.b16 %v103
  %v880 = vunpack.c.h.b16 %v103
  %v881 = vunpack.c.l.b16 %v104
  %v882 = vunpack.c.h.b16 %v104
  %v883 = vunpack.c.l.b16 %v105
  %v884 = vunpack.c.h.b16 %v105
  %v885 = vunpack.c.l.b16 %v106
  %v886 = vunpack.c.h.b16 %v106
  %v887 = vunpack.c.l.b16 %v107
  %v888 = vunpack.c.h.b16 %v107
  %v889 = vunpack.c.l.b16 %v108
  %v890 = vunpack.c.h.b16 %v108
  %v891 = vunpack.c.l.b16 %v109
  %v892 = vunpack.c.h.b16 %v109
  %v893 = vunpack.c.l.b16 %v110
  %v894 = vunpack.c.h.b16 %v110
  %v895 = vunpack.c.l.b16 %v111
  %v896 = vunpack.c.h.b16 %v111
  %v897 = vunpack.c.l.b16 %v112
  %v898 = vunpack.c.h.b16 %v112
  %v899 = vunpack.c.l.b16 %v113
  %v900 = vunpack.c.h.b16 %v113
  %v901 = vunpack.c.l.b16 %v114
  %v902 = vunpack.c.h.b16 %v114
  %v903 = vunpack.c.l.b16 %v115
  %v904 = vunpack.c.h.b16 %v115
  %v905 = vunpack.c.l.b16 %v116
  %v906 = vunpack.c.h.b16 %v116
  %v907 = vunpack.c.l.b16 %v117
  %v908 = vunpack.c.h.b16 %v117
  %v909 = vunpack.c.l.b16 %v118
  %v910 = vunpack.c.h.b16 %v118
  %v911 = vunpack.c.l.b16 %v119
  %v912 = vunpack.c.h.b16 %v119
  %v913 = vunpack.c.l.b16 %v120
  %v914 = vunpack.c.h.b16 %v120
  %v915 = vunpack.c.l.b16 %v121
  %v916 = vunpack.c.h.b16 %v121
  %v917 = vunpack.c.l.b16 %v122
  %v918 = vunpack.c.h.b16 %v122
  %v919 = vunpack.c.l.b16 %v123
  %v920 = vunpack.c.h.b16 %v123
  %v921 = vunpack.c.l.b16 %v124
  %v922 = vunpack.c.h.b16 %v124
  %v923 = vunpack.c.l.b16 %v125
  %v924 = vunpack.c.h.b16 %v125
  %v925 = vunpack.c.l.b16 %v126
  %v926 = vunpack.c.h.b16 %v126
  %v927 = vunpack.c.l.b16 %v127
  %v928 = vunpack.c.h.b16 %v127
  %v929 = vunpack.c.l.b16 %v128
  %v930 = vunpack.c.h.b16 %v128
  %v931 = vunpack.c.l.b16 %v129
  %v932 = vunpack.c.h.b16 %v129
  %v933 = vunpack.c.l.b16 %v130
  %v934 = vunpack.c.h.b16 %v130
  %v935 = vunpack.c.l.b16 %v131
  %v936 = vunpack.c.h.b16 %v131
  %v937 = vunpack.c.l.b16 %v132
  %v938 = vunpack.c.h.b16 %v132
  %v939 = vunpack.c.l.b16 %v133
  %v940 = vunpack.c.h.b16 %v133
  %v941 = vunpack.c.l.b16 %v134
  %v942 = vunpack.c.h.b16 %v134
  %v943 = vunpack.c.l.b16 %v135
  %v944 = vunpack.c.h.b16 %v135
  %v945 = vunpack.c.l.b16 %v136
  %v946 = vunpack.c.h.b16 %v136
  %v947 = vunpack.c.l.b16 %v137
  %v948 = vunpack.c.h.b16 %v137
  %v949 = vunpack.c.l.b16 %v138
  %v950 = vunpack.c.h.b16 %v138
  %v951 = vunpack.c.l.b16 %v139
  %v952 = vunpack.c.h.b16 %v139
  %v953 = vunpack.c.l.b16 %v140
  %v954 = vunpack.c.h.b16 %v140
  %v955 = vunpack.c.l.b16 %v141
  %v956 = vunpack.c.h.b16 %v141
  %v957 = vunpack.c.l.b16 %v142
  %v958 = vunpack.c.h.b16 %v142
  %v959 = vunpack.c.l.b16 %v143
  %v960 = vunpack.c.h.b16 %v143
  %v961 = vunpack.c.l.b16 %v144
  %v962 = vunpack.c.h.b16 %v144
  %v963 = vunpack.c.l.b16 %v145
  %v964 = vunpack.c.h.b16 %v145
  %v965 = vunpack.c.l.b16 %v146
  %v966 = vunpack.c.h.b16 %v146
  %v967 = vunpack.c.l.b16 %v147
  %v968 = vunpack.c.h.b16 %v147
  %v969 = vunpack.c.l.b16 %v148
  %v970 = vunpack.c.h.b16 %v148
  %v971 = vunpack.c.l.b16 %v149
  %v972 = vunpack.c.h.b16 %v149
  %v973 = vunpack.c.l.b16 %v150
  %v974 = vunpack.c.h.b16 %v150
  %v975 = vunpack.c.l.b16 %v151
  %v976 = vunpack.c.h.b16 %v151
  %v977 = vunpack.c.l.b16 %v152
  %v978 = vunpack.c.h.b16 %v152
  %v979 = vunpack.c.l.b16 %v153
  %v980 = vunpack.c.h.b16 %v153
  %v981 = vunpack.c.l.b16 %v154
  %v982 = vunpack.c.h.b16 %v154
  %v983 = vunpack.c.l.b16 %v155
  %v984 = vunpack.c.h.b16 %v155
  %v985 = vunpack.c.l.b16 %v156
  %v986 = vunpack.c.h.b16 %v156
  %v987 = vunpack.c.l.b16 %v157
  %v988 = vunpack.c.h.b16 %v157
  %v989 = vunpack.c.l.b16 %v158
  %v990 = vunpack.c.h.b16 %v158
  %v991 = vunpack.c.l.b16 %v159
  %v992 = vunpack.c.h.b16 %v159
  %v993 = vunpack.c.l.b16 %v160
  %v994 = vunpack.c.h.b16 %v160
  %v995 = vunpack.c.l.b16 %v161
  %v996 = vunpack.c.h.b16 %v161
  %v997 = vunpack.c.l.b16 %v162
  %v998 = vunpack.c.h.b16 %v162
  %v999 = vunpack.c.l.b16 %v163
  %v1000 = vunpack.c.h.b16 %v163
  %v1001 = vunpack.c.l.b16 %v164
  %v1002 = vunpack.c.h.b16 %v164
  %v1003 = vunpack.c.l.b16 %v165
  %v1004 = vunpack.c.h.b16 %v165
  %v1005 = vunpack.c.l.b16 %v166
  %v1006 = vunpack.c.h.b16 %v166
  %v1007 = vunpack.c.l.b16 %v167
  %v1008 = vunpack.c.h.b16 %v167
  %v1009 = vunpack.c.l.b16 %v168
  %v1010 = vunpack.c.h.b16 %v168
  %v1011 = vunpack.c.l.b16 %v169
  %v1012 = vunpack.c.h.b16 %v169
  %v1013 = vunpack.c.l.b16 %v170
  %v1014 = vunpack.c.h.b16 %v170
  %v1015 = vunpack.c.l.b16 %v171
  %v1016 = vunpack.c.h.b16 %v171
  %v1017 = vunpack.c.l.b16 %v172
  %v1018 = vunpack.c.h.b16 %v172
  %v1019 = vunpack.c.l.b16 %v173
  %v1020 = vunpack.c.h.b16 %v173
  %v1021 = vunpack.c.l.b16 %v174
  %v1022 = vunpack.c.h.b16 %v174
  %v1023 = vunpack.c.l.b16 %v175
  %v1024 = vunpack.c.h.b16 %v175
  %v1025 = vunpack.c.l.b16 %v176
  %v1026 = vunpack.c.h.b16 %v176
  %v1027 = vunpack.c.l.b16 %v177
  %v1028 = vunpack.c.h.b16 %v177
  %v1029 = vunpack.c.l.b16 %v178
  %v1030 = vunpack.c.h.b16 %v178
  %v1031 = vunpack.c.l.b16 %v179
  %v1032 = vunpack.c.h.b16 %v179
  %v1033 = vunpack.c.l.b16 %v180
  %v1034 = vunpack.c.h.b16 %v180
  %v1035 = vunpack.c.l.b16 %v181
  %v1036 = vunpack.c.h.b16 %v181
  %v1037 = vunpack.c.l.b16 %v182
  %v1038 = vunpack.c.h.b16 %v182
  %v1039 = vunpack.c.l.b16 %v183
  %v1040 = vunpack.c.h.b16 %v183
  %v1041 = vunpack.c.l.b16 %v184
  %v1042 = vunpack.c.h.b16 %v184
  %v1043 = vunpack.c.l.b16 %v185
  %v1044 = vunpack.c.h.b16 %v185
  %v1045 = vunpack.c.l.b16 %v186
  %v1046 = vunpack.c.h.b16 %v186
  %v1047 = vunpack.c.l.b16 %v187
  %v1048 = vunpack.c.h.b16 %v187
  %v1049 = vunpack.c.l.b16 %v188
  %v1050 = vunpack.c.h.b16 %v188
  %v1051 = vunpack.c.l.b16 %v189
  %v1052 = vunpack.c.h.b16 %v189
  %v1053 = vunpack.c.l.b16 %v190
  %v1054 = vunpack.c.h.b16 %v190
  %v1055 = vunpack.c.l.b16 %v191
  %v1056 = vunpack.c.h.b16 %v191
  %v1057 = vunpack.c.l.b16 %v192
  %v1058 = vunpack.c.h.b16 %v192
  %v1059 = vunpack.c.l.b16 %v193
  %v1060 = vunpack.c.h.b16 %v193
  %v1061 = vunpack.c.l.b16 %v194
  %v1062 = vunpack.c.h.b16 %v194
  %v1063 = vunpack.c.l.b16 %v195
  %v1064 = vunpack.c.h.b16 %v195
  %v1065 = vunpack.c.l.b16 %v196
  %v1066 = vunpack.c.h.b16 %v196
  %v1067 = vunpack.c.l.b16 %v197
  %v1068 = vunpack.c.h.b16 %v197
  %v1069 = vunpack.c.l.b16 %v198
  %v1070 = vunpack.c.h.b16 %v198
  %v1071 = vunpack.c.l.b16 %v199
  %v1072 = vunpack.c.h.b16 %v199
  %v1073 = vunpack.c.l.b16 %v200
  %v1074 = vunpack.c.h.b16 %v200
  %v1075 = vunpack.c.l.b16 %v201
  %v1076 = vunpack.c.h.b16 %v201
  %v1077 = vunpack.c.l.b16 %v202
  %v1078 = vunpack.c.h.b16 %v202
  %v1079 = vunpack.c.l.b16 %v203
  %v1080 = vunpack.c.h.b16 %v203
  %v1081 = vunpack.c.l.b16 %v204
  %v1082 = vunpack.c.h.b16 %v204
  %v1083 = vunpack.c.l.b16 %v205
  %v1084 = vunpack.c.h.b16 %v205
  %v1085 = vunpack.c.l.b16 %v206
  %v1086 = vunpack.c.h.b16 %v206
  %v1087 = vunpack.c.l.b16 %v207
  %v1088 = vunpack.c.h.b16 %v207
  %v1089 = vunpack.c.l.b16 %v208
  %v1090 = vunpack.c.h.b16 %v208
  %v1091 = vunpack.c.l.b16 %v209
  %v1092 = vunpack.c.h.b16 %v209
  %v1093 = vunpack.c.l.b16 %v210
  %v1094 = vunpack.c.h.b16 %v210
  %v1095 = vunpack.c.l.b16 %v211
  %v1096 = vunpack.c.h.b16 %v211
  %v1097 = vunpack.c.l.b16 %v212
  %v1098 = vunpack.c.h.b16 %v212
  %v1099 = vunpack.c.l.b16 %v213
  %v1100 = vunpack.c.h.b16 %v213
  %v1101 = vunpack.c.l.b16 %v214
  %v1102 = vunpack.c.h.b16 %v214
  %v1103 = vunpack.c.l.b16 %v215
  %v1104 = vunpack.c.h.b16 %v215
  %v1105 = vunpack.c.l.b16 %v216
  %v1106 = vunpack.c.h.b16 %v216
  %v1107 = vunpack.c.l.b16 %v217
  %v1108 = vunpack.c.h.b16 %v217
  %v1109 = vunpack.c.l.b16 %v218
  %v1110 = vunpack.c.h.b16 %v218
  %v1111 = vunpack.c.l.b16 %v219
  %v1112 = vunpack.c.h.b16 %v219
  %v1113 = vunpack.c.l.b16 %v220
  %v1114 = vunpack.c.h.b16 %v220
  %v1115 = vunpack.c.l.b16 %v221
  %v1116 = vunpack.c.h.b16 %v221
  %v1117 = vunpack.c.l.b16 %v222
  %v1118 = vunpack.c.h.b16 %v222
  %v1119 = vunpack.c.l.b16 %v223
  %v1120 = vunpack.c.h.b16 %v223
  %v1121 = vunpack.c.l.b16 %v224
  %v1122 = vunpack.c.h.b16 %v224
  %v1123 = vunpack.c.l.b16 %v225
  %v1124 = vunpack.c.h.b16 %v225
  %v1125 = vunpack.c.l.b16 %v226
  %v1126 = vunpack.c.h.b16 %v226
  %v1127 = vunpack.c.l.b16 %v227
  %v1128 = vunpack.c.h.b16 %v227
  %v1129 = vunpack.c.l.b16 %v228
  %v1130 = vunpack.c.h.b16 %v228
  %v1131 = vunpack.c.l.b16 %v229
  %v1132 = vunpack.c.h.b16 %v229
  %v1133 = vunpack.c.l.b16 %v230
  %v1134 = vunpack.c.h.b16 %v230
  %v1135 = vunpack.c.l.b16 %v231
  %v1136 = vunpack.c.h.b16 %v231
  %v1137 = vunpack.c.l.b16 %v232
  %v1138 = vunpack.c.h.b16 %v232
  %v1139 = vunpack.c.l.b16 %v233
  %v1140 = vunpack.c.h.b16 %v233
  %v1141 = vunpack.c.l.b16 %v234
  %v1142 = vunpack.c.h.b16 %v234
  %v1143 = vunpack.c.l.b16 %v235
  %v1144 = vunpack.c.h.b16 %v235
  %v1145 = vunpack.c.l.b16 %v236
  %v1146 = vunpack.c.h.b16 %v236
  %v1147 = vunpack.c.l.b16 %v237
  %v1148 = vunpack.c.h.b16 %v237
  %v1149 = vunpack.c.l.b16 %v238
  %v1150 = vunpack.c.h.b16 %v238
  %v1151 = vunpack.c.l.b16 %v239
  %v1152 = vunpack.c.h.b16 %v239
  %v1153 = vunpack.c.l.b16 %v240
  %v1154 = vunpack.c.h.b16 %v240
  %v1155 = vunpack.c.l.b16 %v241
  %v1156 = vunpack.c.h.b16 %v241
  %v1157 = vunpack.c.l.b16 %v242
  %v1158 = vunpack.c.h.b16 %v242
  %v1159 = vunpack.c.l.b16 %v243
  %v1160 = vunpack.c.h.b16 %v243
  %v1161 = vunpack.c.l.b16 %v244
  %v1162 = vunpack.c.h.b16 %v244
  %v1163 = vunpack.c.l.b16 %v245
  %v1164 = vunpack.c.h.b16 %v245
  %v1165 = vunpack.c.l.b16 %v246
  %v1166 = vunpack.c.h.b16 %v246
  %v1167 = vunpack.c.l.b16 %v247
  %v1168 = vunpack.c.h.b16 %v247
  %v1169 = vunpack.c.l.b16 %v248
  %v1170 = vunpack.c.h.b16 %v248
  %v1171 = vunpack.c.l.b16 %v249
  %v1172 = vunpack.c.h.b16 %v249
  %v1173 = vunpack.c.l.b16 %v250
  %v1174 = vunpack.c.h.b16 %v250
  %v1175 = vunpack.c.l.b16 %v251
  %v1176 = vunpack.c.h.b16 %v251
  %v1177 = vunpack.c.l.b16 %v252
  %v1178 = vunpack.c.h.b16 %v252
  %v1179 = vunpack.c.l.b16 %v253
  %v1180 = vunpack.c.h.b16 %v253
  %v1181 = vunpack.c.l.b16 %v254
  %v1182 = vunpack.c.h.b16 %v254
  %v1183 = vunpack.c.l.b16 %v255
  %v1184 = vunpack.c.h.b16 %v255
  %v1185 = vunpack.c.l.b16 %v256
  %v1186 = vunpack.c.h.b16 %v256
  %v1187 = vunpack.c.l.b16 %v257
  %v1188 = vunpack.c.h.b16 %v257
  %v1189 = vunpack.c.l.b16 %v258
  %v1190 = vunpack.c.h.b16 %v258
  %v1191 = vunpack.c.l.b16 %v259
  %v1192 = vunpack.c.h.b16 %v259
  %v1193 = vunpack.c.l.b16 %v260
  %v1194 = vunpack.c.h.b16 %v260
  %v1195 = vunpack.c.l.b16 %v261
  %v1196 = vunpack.c.h.b16 %v261
  %v1197 = vunpack.c.l.b16 %v262
  %v1198 = vunpack.c.h.b16 %v262
  %v1199 = vunpack.c.l.b16 %v263
  %v1200 = vunpack.c.h.b16 %v263
  %v1201 = vunpack.c.l.b16 %v264
  %v1202 = vunpack.c.h.b16 %v264
  %v1203 = vunpack.c.l.b16 %v265
  %v1204 = vunpack.c.h.b16 %v265
  %v1205 = vunpack.c.l.b16 %v266
  %v1206 = vunpack.c.h.b16 %v266
  %v1207 = vunpack.c.l.b16 %v267
  %v1208 = vunpack.c.h.b16 %v267
  %v1209 = vunpack.c.l.b16 %v268
  %v1210 = vunpack.c.h.b16 %v268
  %v1211 = vunpack.c.l.b16 %v269
  %v1212 = vunpack.c.h.b16 %v269
  %v1213 = vunpack.c.l.b16 %v270
  %v1214 = vunpack.c.h.b16 %v270
  %v1215 = vunpack.c.l.b16 %v271
  %v1216 = vunpack.c.h.b16 %v271
  %v1217 = vunpack.c.l.b16 %v272
  %v1218 = vunpack.c.h.b16 %v272
  %v1219 = vunpack.c.l.b16 %v273
  %v1220 = vunpack.c.h.b16 %v273
  %v1221 = vunpack.c.l.b16 %v274
  %v1222 = vunpack.c.h.b16 %v274
  %v1223 = vunpack.c.l.b16 %v275
  %v1224 = vunpack.c.h.b16 %v275
  %v1225 = vunpack.c.l.b16 %v276
  %v1226 = vunpack.c.h.b16 %v276
  %v1227 = vunpack.c.l.b16 %v277
  %v1228 = vunpack.c.h.b16 %v277
  %v1229 = vunpack.c.l.b16 %v278
  %v1230 = vunpack.c.h.b16 %v278
  %v1231 = vunpack.c.l.b16 %v279
  %v1232 = vunpack.c.h.b16 %v279
  %v1233 = vunpack.c.l.b16 %v280
  %v1234 = vunpack.c.h.b16 %v280
  %v1235 = vunpack.c.l.b16 %v281
  %v1236 = vunpack.c.h.b16 %v281
  %v1237 = vunpack.c.l.b16 %v282
  %v1238 = vunpack.c.h.b16 %v282
  %v1239 = vunpack.c.l.b16 %v283
  %v1240 = vunpack.c.h.b16 %v283
  %v1241 = vunpack.c.l.b16 %v284
  %v1242 = vunpack.c.h.b16 %v284
  %v1243 = vunpack.c.l.b16 %v285
  %v1244 = vunpack.c.h.b16 %v285
  %v1245 = vunpack.c.l.b16 %v286
  %v1246 = vunpack.c.h.b16 %v286
  %v1247 = vunpack.c.l.b16 %v287
  %v1248 = vunpack.c.h.b16 %v287
  %v1249 = vunpack.c.l.b16 %v288
  %v1250 = vunpack.c.h.b16 %v288
  %v1251 = vunpack.c.l.b16 %v289
  %v1252 = vunpack.c.h.b16 %v289
  %v1253 = vunpack.c.l.b16 %v290
  %v1254 = vunpack.c.h.b16 %v290
  %v1255 = vunpack.c.l.b16 %v291
  %v1256 = vunpack.c.h.b16 %v291
  %v1257 = vunpack.c.l.b16 %v292
  %v1258 = vunpack.c.h.b16 %v292
  %v1259 = vunpack.c.l.b16 %v293
  %v1260 = vunpack.c.h.b16 %v293
  %v1261 = vunpack.c.l.b16 %v294
  %v1262 = vunpack.c.h.b16 %v294
  %v1263 = vunpack.c.l.b16 %v295
  %v1264 = vunpack.c.h.b16 %v295
  %v1265 = vunpack.c.l.b16 %v296
  %v1266 = vunpack.c.h.b16 %v296
  %v1267 = vunpack.c.l.b16 %v297
  %v1268 = vunpack.c.h.b16 %v297
  %v1269 = vunpack.c.l.b16 %v298
  %v1270 = vunpack.c.h.b16 %v298
  %v1271 = vunpack.c.l.b16 %v299
  %v1272 = vunpack.c.h.b16 %v299
  %v1273 = vunpack.c.l.b16 %v300
  %v1274 = vunpack.c.h.b16 %v300
  %v1275 = vunpack.c.l.b16 %v301
  %v1276 = vunpack.c.h.b16 %v301
  %v1277 = vunpack.c.l.b16 %v302
  %v1278 = vunpack.c.h.b16 %v302
  %v1279 = vunpack.c.l.b16 %v303
  %v1280 = vunpack.c.h.b16 %v303
  %v1281 = vunpack.c.l.b16 %v304
  %v1282 = vunpack.c.h.b16 %v304
  %v1283 = vunpack.c.l.b16 %v305
  %v1284 = vunpack.c.h.b16 %v305
  %v1285 = vunpack.c.l.b16 %v306
  %v1286 = vunpack.c.h.b16 %v306
  %v1287 = vunpack.c.l.b16 %v307
  %v1288 = vunpack.c.h.b16 %v307
  %v1289 = vunpack.c.l.b16 %v308
  %v1290 = vunpack.c.h.b16 %v308
  %v1291 = vpack.c.b16 %v847, %v843
  %v1292 = vpack.c.b16 %v848, %v844
  %v1293 = vpack.c.b16 %v849, %v845
  %v1294 = vpack.c.b16 %v850, %v846
  %v1295 = vpack.c.b16 %v855, %v851
  %v1296 = vpack.c.b16 %v856, %v852
  %v1297 = vpack.c.b16 %v857, %v853
  %v1298 = vpack.c.b16 %v858, %v854
  %v1299 = vpack.c.b16 %v863, %v859
  %v1300 = vpack.c.b16 %v864, %v860
  %v1301 = vpack.c.b16 %v865, %v861
  %v1302 = vpack.c.b16 %v866, %v862
  %v1303 = vpack.c.b16 %v871, %v867
  %v1304 = vpack.c.b16 %v872, %v868
  %v1305 = vpack.c.b16 %v873, %v869
  %v1306 = vpack.c.b16 %v874, %v870
  %v1307 = vpack.c.b16 %v879, %v875
  %v1308 = vpack.c.b16 %v880, %v876
  %v1309 = vpack.c.b16 %v881, %v877
  %v1310 = vpack.c.b16 %v882, %v878
  %v1311 = vpack.c.b16 %v887, %v883
  %v1312 = vpack.c.b16 %v888, %v884
  %v1313 = vpack.c.b16 %v889, %v885
  %v1314 = vpack.c.b16 %v890, %v886
  %v1315 = vpack.c.b16 %v895, %v891
  %v1316 = vpack.c.b16 %v896, %v892
  %v1317 = vpack.c.b16 %v897, %v893
  %v1318 = vpack.c.b16 %v898, %v894
  %v1319 = vpack.c.b16 %v903, %v899
  %v1320 = vpack.c.b16 %v904, %v900
  %v1321 = vpack.c.b16 %v905, %v901
  %v1322 = vpack.c.b16 %v906, %v902
  %v1323 = vpack.c.b16 %v911, %v907
  %v1324 = vpack.c.b16 %v912, %v908
  %v1325 = vpack.c.b16 %v913, %v909
  %v1326 = vpack.c.b16 %v914, %v910
  %v1327 = vpack.c.b16 %v919, %v915
  %v1328 = vpack.c.b16 %v920, %v916
  %v1329 = vpack.c.b16 %v921, %v917
  %v1330 = vpack.c.b16 %v922, %v918
  %v1331 = vpack.c.b16 %v927, %v923
  %v1332 = vpack.c.b16 %v928, %v924
  %v1333 = vpack.c.b16 %v929, %v925
  %v1334 = vpack.c.b16 %v930, %v926
  %v1335 = vpack.c.b16 %v935, %v931
  %v1336 = vpack.c.b16 %v936, %v932
  %v1337 = vpack.c.b16 %v937, %v933
  %v1338 = vpack.c.b16 %v938, %v934
  %v1339 = vpack.c.b16 %v943, %v939
  %v1340 = vpack.c.b16 %v944, %v940
  %v1341 = vpack.c.b16 %v945, %v941
  %v1342 = vpack.c.b16 %v946, %v942
  %v1343 = vpack.c.b16 %v951, %v947
  %v1344 = vpack.c.b16 %v952, %v948
  %v1345 = vpack.c.b16 %v953, %v949
  %v1346 = vpack.c.b16 %v954, %v950
  %v1347 = vpack.c.b16 %v959, %v955
  %v1348 = vpack.c.b16 %v960, %v956
  %v1349 = vpack.c.b16 %v961, %v957
  %v1350 = vpack.c.b16 %v962, %v958
  %v1351 = vpack.c.b16 %v967, %v963
  %v1352 = vpack.c.b16 %v968, %v964
  %v1353 = vpack.c.b16 %v969, %v965
  %v1354 = vpack.c.b16 %v970, %v966
  %v1355 = vpack.c.b16 %v975, %v971
  %v1356 = vpack.c.b16 %v976, %v972
  %v1357 = vpack.c.b16 %v977, %v973
  %v1358 = vpack.c.b16 %v978, %v974
  %v1359 = vpack.c.b16 %v983, %v979
  %v1360 = vpack.c.b16 %v984, %v980
  %v1361 = vpack.c.b16 %v985, %v981
  %v1362 = vpack.c.b16 %v986, %v982
  %v1363 = vpack.c.b16 %v991, %v987
  %v1364 = vpack.c.b16 %v992, %v988
  %v1365 = vpack.c.b16 %v993, %v989
  %v1366 = vpack.c.b16 %v994, %v990
  %v1367 = vpack.c.b16 %v999, %v995
  %v1368 = vpack.c.b16 %v1000, %v996
  %v1369 = vpack.c.b16 %v1001, %v997
  %v1370 = vpack.c.b16 %v1002, %v998
  %v1371 = vpack.c.b16 %v1007, %v1003
  %v1372 = vpack.c.b16 %v1008, %v1004
  %v1373 = vpack.c.b16 %v1009, %v1005
  %v1374 = vpack.c.b16 %v1010, %v1006
  %v1375 = vpack.c.b16 %v1015, %v1011
  %v1376 = vpack.c.b16 %v1016, %v1012
  %v1377 = vpack.c.b16 %v1017, %v1013
  %v1378 = vpack.c.b16 %v1018, %v1014
  %v1379 = vpack.c.b16 %v1023, %v1019
  %v1380 = vpack.c.b16 %v1024, %v1020
  %v1381 = vpack.c.b16 %v1025, %v1021
  %v1382 = vpack.c.b16 %v1026, %v1022
  %v1383 = vpack.c.b16 %v1031, %v1027
  %v1384 = vpack.c.b16 %v1032, %v1028
  %v1385 = vpack.c.b16 %v1033, %v1029
  %v1386 = vpack.c.b16 %v1034, %v1030
  %v1387 = vpack.c.b16 %v1039, %v1035
  %v1388 = vpack.c.b16 %v1040, %v1036
  %v1389 = vpack.c.b16 %v1041, %v1037
  %v1390 = vpack.c.b16 %v1042, %v1038
  %v1391 = vpack.c.b16 %v1047, %v1043
  %v1392 = vpack.c.b16 %v1048, %v1044
  %v1393 = vpack.c.b16 %v1049, %v1045
  %v1394 = vpack.c.b16 %v1050, %v1046
  %v1395 = vpack.c.b16 %v1055, %v1051
  %v1396 = vpack.c.b16 %v1056, %v1052
  %v1397 = vpack.c.b16 %v1057, %v1053
  %v1398 = vpack.c.b16 %v1058, %v1054
  %v1399 = vpack.c.b16 %v1063, %v1059
  %v1400 = vpack.c.b16 %v1064, %v1060
  %v1401 = vpack.c.b16 %v1065, %v1061
  %v1402 = vpack.c.b16 %v1066, %v1062
  %v1403 = vpack.c.b16 %v1071, %v1067
  %v1404 = vpack.c.b16 %v1072, %v1068
  %v1405 = vpack.c.b16 %v1073, %v1069
  %v1406 = vpack.c.b16 %v1074, %v1070
  %v1407 = vpack.c.b16 %v1079, %v1075
  %v1408 = vpack.c.b16 %v1080, %v1076
  %v1409 = vpack.c.b16 %v1081, %v1077
  %v1410 = vpack.c.b16 %v1082, %v1078
  %v1411 = vpack.c.b16 %v1087, %v1083
  %v1412 = vpack.c.b16 %v1088, %v1084
  %v1413 = vpack.c.b16 %v1089, %v1085
  %v1414 = vpack.c.b16 %v1090, %v1086
  %v1415 = vpack.c.b16 %v1095, %v1091
  %v1416 = vpack.c.b16 %v1096, %v1092
  %v1417 = vpack.c.b16 %v1097, %v1093
  %v1418 = vpack.c.b16 %v1098, %v1094
  %v1419 = vpack.c.b16 %v1103, %v1099
  %v1420 = vpack.c.b16 %v1104, %v1100
  %v1421 = vpack.c.b16 %v1105, %v1101
  %v1422 = vpack.c.b16 %v1106, %v1102
  %v1423 = vpack.c.b16 %v1111, %v1107
  %v1424 = vpack.c.b16 %v1112, %v1108
  %v1425 = vpack.c.b16 %v1113, %v1109
  %v1426 = vpack.c.b16 %v1114, %v1110
  %v1427 = vpack.c.b16 %v1119, %v1115
  %v1428 = vpack.c.b16 %v1120, %v1116
  %v1429 = vpack.c.b16 %v1121, %v1117
  %v1430 = vpack.c.b16 %v1122, %v1118
  %v1431 = vpack.c.b16 %v1127, %v1123
  %v1432 = vpack.c.b16 %v1128, %v1124
  %v1433 = vpack.c.b16 %v1129, %v1125
  %v1434 = vpack.c.b16 %v1130, %v1126
  %v1435 = vpack.c.b16 %v1135, %v1131
  %v1436 = vpack.c.b16 %v1136, %v1132
  %v1437 = vpack.c.b16 %v1137, %v1133
  %v1438 = vpack.c.b16 %v1138, %v1134
  %v1439 = vpack.c.b16 %v1143, %v1139
  %v1440 = vpack.c.b16 %v1144, %v1140
  %v1441 = vpack.c.b16 %v1145, %v1141
  %v1442 = vpack.c.b16 %v1146, %v1142
  %v1443 = vpack.c.b16 %v1151, %v1147
  %v1444 = vpack.c.b16 %v1152, %v1148
  %v1445 = vpack.c.b16 %v1153, %v1149
  %v1446 = vpack.c.b16 %v1154, %v1150
  %v1447 = vpack.c.b16 %v1159, %v1155
  %v1448 = vpack.c.b16 %v1160, %v1156
  %v1449 = vpack.c.b16 %v1161, %v1157
  %v1450 = vpack.c.b16 %v1162, %v1158
  %v1451 = vpack.c.b16 %v1167, %v1163
  %v1452 = vpack.c.b16 %v1168, %v1164
  %v1453 = vpack.c.b16 %v1169, %v1165
  %v1454 = vpack.c.b16 %v1170, %v1166
  %v1455 = vpack.c.b16 %v1175, %v1171
  %v1456 = vpack.c.b16 %v1176, %v1172
  %v1457 = vpack.c.b16 %v1177, %v1173
  %v1458 = vpack.c.b16 %v1178, %v1174
  %v1459 = vpack.c.b16 %v1183, %v1179
  %v1460 = vpack.c.b16 %v1184, %v1180
  %v1461 = vpack.c.b16 %v1185, %v1181
  %v1462 = vpack.c.b16 %v1186, %v1182
  %v1463 = vpack.c.b16 %v1191, %v1187
  %v1464 = vpack.c.b16 %v1192, %v1188
  %v1465 = vpack.c.b16 %v1193, %v1189
  %v1466 = vpack.c.b16 %v1194, %v1190
  %v1467 = vpack.c.b16 %v1199, %v1195
  %v1468 = vpack.c.b16 %v1200, %v1196
  %v1469 = vpack.c.b16 %v1201, %v1197
  %v1470 = vpack.c.b16 %v1202, %v1198
  %v1471 = vpack.c.b16 %v1207, %v1203
  %v1472 = vpack.c.b16 %v1208, %v1204
  %v1473 = vpack.c.b16 %v1209, %v1205
  %v1474 = vpack.c.b16 %v1210, %v1206
  %v1475 = vpack.c.b16 %v1215, %v1211
  %v1476 = vpack.c.b16 %v1216, %v1212
  %v1477 = vpack.c.b16 %v1217, %v1213
  %v1478 = vpack.c.b16 %v1218, %v1214
  %v1479 = vpack.c.b16 %v1223, %v1219
  %v1480 = vpack.c.b16 %v1224, %v1220
  %v1481 = vpack.c.b16 %v1225, %v1221
  %v1482 = vpack.c.b16 %v1226, %v1222
  %v1483 = vpack.c.b16 %v1231, %v1227
  %v1484 = vpack.c.b16 %v1232, %v1228
  %v1485 = vpack.c.b16 %v1233, %v1229
  %v1486 = vpack.c.b16 %v1234, %v1230
  %v1487 = vpack.c.b16 %v1239, %v1235
  %v1488 = vpack.c.b16 %v1240, %v1236
  %v1489 = vpack.c.b16 %v1241, %v1237
  %v1490 = vpack.c.b16 %v1242, %v1238
  %v1491 = vpack.c.b16 %v1247, %v1243
  %v1492 = vpack.c.b16 %v1248, %v1244
  %v1493 = vpack.c.b16 %v1249, %v1245
  %v1494 = vpack.c.b16 %v1250, %v1246
  %v1495 = vpack.c.b16 %v1255, %v1251
  %v1496 = vpack.c.b16 %v1256, %v1252
  %v1497 = vpack.c.b16 %v1257, %v1253
  %v1498 = vpack.c.b16 %v1258, %v1254
  %v1499 = vpack.c.b16 %v1263, %v1259
  %v1500 = vpack.c.b16 %v1264, %v1260
  %v1501 = vpack.c.b16 %v1265, %v1261
  %v1502 = vpack.c.b16 %v1266, %v1262
  %v1503 = vpack.c.b16 %v1271, %v1267
  %v1504 = vpack.c.b16 %v1272, %v1268
  %v1505 = vpack.c.b16 %v1273, %v1269
  %v1506 = vpack.c.b16 %v1274, %v1270
  %v1507 = vpack.c.b16 %v1279, %v1275
  %v1508 = vpack.c.b16 %v1280, %v1276
  %v1509 = vpack.c.b16 %v1281, %v1277
  %v1510 = vpack.c.b16 %v1282, %v1278
  %v1511 = vpack.c.b16 %v1287, %v1283
  %v1512 = vpack.c.b16 %v1288, %v1284
  %v1513 = vpack.c.b16 %v1289, %v1285
  %v1514 = vpack.c.b16 %v1290, %v1286
  %1739 = vmatprep.subr.bf16.mxu0 %v1292
  %1740 = vmatpush1.bf16.msra.mxu0 %v1291
  %1741 = vmatprep.subr.bf16.mxu0 %v1296
  %1742 = vmatpush1.bf16.msra.mxu0 %v1295
  %1743 = vmatprep.subr.bf16.mxu0 %v1300
  %1744 = vmatpush1.bf16.msra.mxu0 %v1299
  %1745 = vmatprep.subr.bf16.mxu0 %v1304
  %1746 = vmatpush1.bf16.msra.mxu0 %v1303
  %1747 = vmatprep.subr.bf16.mxu0 %v1308
  %1748 = vmatpush1.bf16.msra.mxu0 %v1307
  %1749 = vmatprep.subr.bf16.mxu0 %v1312
  %1750 = vmatpush1.bf16.msra.mxu0 %v1311
  %1751 = vmatprep.subr.bf16.mxu0 %v1316
  %1752 = vmatpush1.bf16.msra.mxu0 %v1315
  %1753 = vmatprep.subr.bf16.mxu0 %v1320
  %1754 = vmatpush1.bf16.msra.mxu0 %v1319
  %1755 = vmatprep.subr.bf16.mxu0 %v1324
  %1756 = vmatpush1.bf16.msra.mxu0 %v1323
  %1757 = vmatprep.subr.bf16.mxu0 %v1328
  %1758 = vmatpush1.bf16.msra.mxu0 %v1327
  %1759 = vmatprep.subr.bf16.mxu0 %v1332
  %1760 = vmatpush1.bf16.msra.mxu0 %v1331
  %1761 = vmatprep.subr.bf16.mxu0 %v1336
  %1762 = vmatpush1.bf16.msra.mxu0 %v1335
  %1763 = vmatprep.subr.bf16.mxu0 %v1340
  %1764 = vmatpush1.bf16.msra.mxu0 %v1339
  %1765 = vmatprep.subr.bf16.mxu0 %v1344
  %1766 = vmatpush1.bf16.msra.mxu0 %v1343
  %1767 = vmatprep.subr.bf16.mxu0 %v1348
  %1768 = vmatpush1.bf16.msra.mxu0 %v1347
  %1769 = vmatprep.subr.bf16.mxu0 %v1352
  %1770 = vmatpush1.bf16.msra.mxu0 %v1351
  %1771 = vmatprep.mubr.bf16.mxu0 %v508
  %1772 = vmatmul.mubr.bf16.gmra.mrb[0].mxu0 %v507
  %v1773 = vpop.f32.mrb[0].mxu0
  %v1774 = vadd.f32 %v314, %v1773
  %v1775 = vpop.f32.mrb[0].mxu0
  %v1776 = vadd.f32 %v318, %v1775
  %v1777 = vpop.f32.mrb[0].mxu0
  %v1778 = vadd.f32 %v314, %v1777
  %v1779 = vpop.f32.mrb[0].mxu0
  %v1780 = vadd.f32 %v318, %v1779
  %1781 = vmatprep.mubr.bf16.mxu0 %v515
  %1782 = vmatmul.mubr.bf16.gmra.mrb[0].mxu0 %v514
  %v1783 = vpop.f32.mrb[0].mxu0
  %v1784 = vadd.f32 %v314, %v1783
  %v1785 = vpop.f32.mrb[0].mxu0
  %v1786 = vadd.f32 %v318, %v1785
  %v1787 = vpop.f32.mrb[0].mxu0
  %v1788 = vadd.f32 %v314, %v1787
  %v1789 = vpop.f32.mrb[0].mxu0
  %v1790 = vadd.f32 %v318, %v1789
  %1791 = vmatprep.mubr.bf16.mxu0 %v522
  %1792 = vmatmul.mubr.bf16.gmra.mrb[0].mxu0 %v521
  %v1793 = vpop.f32.mrb[0].mxu0
  %v1794 = vadd.f32 %v314, %v1793
  %v1795 = vpop.f32.mrb[0].mxu0
  %v1796 = vadd.f32 %v318, %v1795
  %v1797 = vpop.f32.mrb[0].mxu0
  %v1798 = vadd.f32 %v314, %v1797
  %v1799 = vpop.f32.mrb[0].mxu0
  %v1800 = vadd.f32 %v318, %v1799
  %1801 = vmatprep.mubr.bf16.mxu0 %v529
  %1802 = vmatmul.mubr.bf16.gmra.mrb[0].mxu0 %v528
  %v1803 = vpop.f32.mrb[0].mxu0
  %v1804 = vadd.f32 %v314, %v1803
  %v1805 = vpop.f32.mrb[0].mxu0
  %v1806 = vadd.f32 %v318, %v1805
  %v1807 = vpop.f32.mrb[0].mxu0
  %v1808 = vadd.f32 %v314, %v1807
  %v1809 = vpop.f32.mrb[0].mxu0
  %v1810 = vadd.f32 %v318, %v1809
  %1811 = vmatprep.mubr.bf16.mxu0 %v536
  %1812 = vmatmul.mubr.bf16.gmra.mrb[0].mxu0 %v535
  %v1813 = vpop.f32.mrb[0].mxu0
  %v1814 = vadd.f32 %v314, %v1813
  %v1815 = vpop.f32.mrb[0].mxu0
  %v1816 = vadd.f32 %v318, %v1815
  %v1817 = vpop.f32.mrb[0].mxu0
  %v1818 = vadd.f32 %v314, %v1817
  %v1819 = vpop.f32.mrb[0].mxu0
  %v1820 = vadd.f32 %v318, %v1819
  %1821 = vmatprep.mubr.bf16.mxu0 %v543
  %1822 = vmatmul.mubr.bf16.gmra.mrb[0].mxu0 %v542
  %v1823 = vpop.f32.mrb[0].mxu0
  %v1824 = vadd.f32 %v314, %v1823
  %v1825 = vpop.f32.mrb[0].mxu0
  %v1826 = vadd.f32 %v318, %v1825
  %v1827 = vpop.f32.mrb[0].mxu0
  %v1828 = vadd.f32 %v314, %v1827
  %v1829 = vpop.f32.mrb[0].mxu0
  %v1830 = vadd.f32 %v318, %v1829
  %1831 = vmatprep.mubr.bf16.mxu0 %v550
  %1832 = vmatmul.mubr.bf16.gmra.mrb[0].mxu0 %v549
  %v1833 = vpop.f32.mrb[0].mxu0
  %v1834 = vadd.f32 %v314, %v1833
  %v1835 = vpop.f32.mrb[0].mxu0
  %v1836 = vadd.f32 %v318, %v1835
  %v1837 = vpop.f32.mrb[0].mxu0
  %v1838 = vadd.f32 %v314, %v1837
  %v1839 = vpop.f32.mrb[0].mxu0
  %v1840 = vadd.f32 %v318, %v1839
  %1841 = vmatprep.mubr.bf16.mxu0 %v557
  %1842 = vmatmul.mubr.bf16.gmra.mrb[0].mxu0 %v556
  %v1843 = vpop.f32.mrb[0].mxu0
  %v1844 = vadd.f32 %v314, %v1843
  %v1845 = vpop.f32.mrb[0].mxu0
  %v1846 = vadd.f32 %v318, %v1845
  %v1847 = vpop.f32.mrb[0].mxu0
  %v1848 = vadd.f32 %v314, %v1847
  %v1849 = vpop.f32.mrb[0].mxu0
  %v1850 = vadd.f32 %v318, %v1849
  %1851 = vdwg.mxu0
  %1852 = vmatprep.subr.bf16.mxu0 %v1356
  %1853 = vmatpush1.bf16.msra.mxu0 %v1355
  %1854 = vmatprep.subr.bf16.mxu0 %v1360
  %1855 = vmatpush1.bf16.msra.mxu0 %v1359
  %1856 = vmatprep.subr.bf16.mxu0 %v1364
  %1857 = vmatpush1.bf16.msra.mxu0 %v1363
  %1858 = vmatprep.subr.bf16.mxu0 %v1368
  %1859 = vmatpush1.bf16.msra.mxu0 %v1367
  %1860 = vmatprep.subr.bf16.mxu0 %v1372
  %1861 = vmatpush1.bf16.msra.mxu0 %v1371
  %1862 = vmatprep.subr.bf16.mxu0 %v1376
  %1863 = vmatpush1.bf16.msra.mxu0 %v1375
  %1864 = vmatprep.subr.bf16.mxu0 %v1380
  %1865 = vmatpush1.bf16.msra.mxu0 %v1379
  %1866 = vmatprep.subr.bf16.mxu0 %v1384
  %1867 = vmatpush1.bf16.msra.mxu0 %v1383
  %1868 = vmatprep.subr.bf16.mxu0 %v1388
  %1869 = vmatpush1.bf16.msra.mxu0 %v1387
  %1870 = vmatprep.subr.bf16.mxu0 %v1392
  %1871 = vmatpush1.bf16.msra.mxu0 %v1391
  %1872 = vmatprep.subr.bf16.mxu0 %v1396
  %1873 = vmatpush1.bf16.msra.mxu0 %v1395
  %1874 = vmatprep.subr.bf16.mxu0 %v1400
  %1875 = vmatpush1.bf16.msra.mxu0 %v1399
  %1876 = vmatprep.subr.bf16.mxu0 %v1404
  %1877 = vmatpush1.bf16.msra.mxu0 %v1403
  %1878 = vmatprep.subr.bf16.mxu0 %v1408
  %1879 = vmatpush1.bf16.msra.mxu0 %v1407
  %1880 = vmatprep.subr.bf16.mxu0 %v1412
  %1881 = vmatpush1.bf16.msra.mxu0 %v1411
  %1882 = vmatprep.subr.bf16.mxu0 %v1416
  %1883 = vmatpush1.bf16.msra.mxu0 %v1415
  %1884 = vmatprep.mubr.bf16.mxu0 %v510
  %1885 = vmatmul.mubr.bf16.gmra.mrb[0].mxu0 %v509
  %v1886 = vpop.f32.mrb[0].mxu0
  %v1887 = vadd.f32 %v1774, %v1886
  %v1888 = vpop.f32.mrb[0].mxu0
  %v1889 = vadd.f32 %v1776, %v1888
  %v1890 = vpop.f32.mrb[0].mxu0
  %v1891 = vadd.f32 %v1778, %v1890
  %v1892 = vpop.f32.mrb[0].mxu0
  %v1893 = vadd.f32 %v1780, %v1892
  %1894 = vmatprep.mubr.bf16.mxu0 %v517
  %1895 = vmatmul.mubr.bf16.gmra.mrb[0].mxu0 %v516
  %v1896 = vpop.f32.mrb[0].mxu0
  %v1897 = vadd.f32 %v1784, %v1896
  %v1898 = vpop.f32.mrb[0].mxu0
  %v1899 = vadd.f32 %v1786, %v1898
  %v1900 = vpop.f32.mrb[0].mxu0
  %v1901 = vadd.f32 %v1788, %v1900
  %v1902 = vpop.f32.mrb[0].mxu0
  %v1903 = vadd.f32 %v1790, %v1902
  %1904 = vmatprep.mubr.bf16.mxu0 %v524
  %1905 = vmatmul.mubr.bf16.gmra.mrb[0].mxu0 %v523
  %v1906 = vpop.f32.mrb[0].mxu0
  %v1907 = vadd.f32 %v1794, %v1906
  %v1908 = vpop.f32.mrb[0].mxu0
  %v1909 = vadd.f32 %v1796, %v1908
  %v1910 = vpop.f32.mrb[0].mxu0
  %v1911 = vadd.f32 %v1798, %v1910
  %v1912 = vpop.f32.mrb[0].mxu0
  %v1913 = vadd.f32 %v1800, %v1912
  %1914 = vmatprep.mubr.bf16.mxu0 %v531
  %1915 = vmatmul.mubr.bf16.gmra.mrb[0].mxu0 %v530
  %v1916 = vpop.f32.mrb[0].mxu0
  %v1917 = vadd.f32 %v1804, %v1916
  %v1918 = vpop.f32.mrb[0].mxu0
  %v1919 = vadd.f32 %v1806, %v1918
  %v1920 = vpop.f32.mrb[0].mxu0
  %v1921 = vadd.f32 %v1808, %v1920
  %v1922 = vpop.f32.mrb[0].mxu0
  %v1923 = vadd.f32 %v1810, %v1922
  %1924 = vmatprep.mubr.bf16.mxu0 %v538
  %1925 = vmatmul.mubr.bf16.gmra.mrb[0].mxu0 %v537
  %v1926 = vpop.f32.mrb[0].mxu0
  %v1927 = vadd.f32 %v1814, %v1926
  %v1928 = vpop.f32.mrb[0].mxu0
  %v1929 = vadd.f32 %v1816, %v1928
  %v1930 = vpop.f32.mrb[0].mxu0
  %v1931 = vadd.f32 %v1818, %v1930
  %v1932 = vpop.f32.mrb[0].mxu0
  %v1933 = vadd.f32 %v1820, %v1932
  %1934 = vmatprep.mubr.bf16.mxu0 %v545
  %1935 = vmatmul.mubr.bf16.gmra.mrb[0].mxu0 %v544
  %v1936 = vpop.f32.mrb[0].mxu0
  %v1937 = vadd.f32 %v1824, %v1936
  %v1938 = vpop.f32.mrb[0].mxu0
  %v1939 = vadd.f32 %v1826, %v1938
  %v1940 = vpop.f32.mrb[0].mxu0
  %v1941 = vadd.f32 %v1828, %v1940
  %v1942 = vpop.f32.mrb[0].mxu0
  %v1943 = vadd.f32 %v1830, %v1942
  %1944 = vmatprep.mubr.bf16.mxu0 %v552
  %1945 = vmatmul.mubr.bf16.gmra.mrb[0].mxu0 %v551
  %v1946 = vpop.f32.mrb[0].mxu0
  %v1947 = vadd.f32 %v1834, %v1946
  %v1948 = vpop.f32.mrb[0].mxu0
  %v1949 = vadd.f32 %v1836, %v1948
  %v1950 = vpop.f32.mrb[0].mxu0
  %v1951 = vadd.f32 %v1838, %v1950
  %v1952 = vpop.f32.mrb[0].mxu0
  %v1953 = vadd.f32 %v1840, %v1952
  %1954 = vmatprep.mubr.bf16.mxu0 %v559
  %1955 = vmatmul.mubr.bf16.gmra.mrb[0].mxu0 %v558
  %v1956 = vpop.f32.mrb[0].mxu0
  %v1957 = vadd.f32 %v1844, %v1956
  %v1958 = vpop.f32.mrb[0].mxu0
  %v1959 = vadd.f32 %v1846, %v1958
  %v1960 = vpop.f32.mrb[0].mxu0
  %v1961 = vadd.f32 %v1848, %v1960
  %v1962 = vpop.f32.mrb[0].mxu0
  %v1963 = vadd.f32 %v1850, %v1962
  %1964 = vdwg.mxu0
  %1965 = vmatprep.subr.bf16.mxu0 %v1420
  %1966 = vmatpush1.bf16.msra.mxu0 %v1419
  %1967 = vmatprep.subr.bf16.mxu0 %v1424
  %1968 = vmatpush1.bf16.msra.mxu0 %v1423
  %1969 = vmatprep.subr.bf16.mxu0 %v1428
  %1970 = vmatpush1.bf16.msra.mxu0 %v1427
  %1971 = vmatprep.subr.bf16.mxu0 %v1432
  %1972 = vmatpush1.bf16.msra.mxu0 %v1431
  %1973 = vmatprep.subr.bf16.mxu0 %v1436
  %1974 = vmatpush1.bf16.msra.mxu0 %v1435
  %1975 = vmatprep.subr.bf16.mxu0 %v1440
  %1976 = vmatpush1.bf16.msra.mxu0 %v1439
  %1977 = vmatprep.subr.bf16.mxu0 %v1444
  %1978 = vmatpush1.bf16.msra.mxu0 %v1443
  %1979 = vmatprep.subr.bf16.mxu0 %v1448
  %1980 = vmatpush1.bf16.msra.mxu0 %v1447
  %1981 = vmatprep.subr.bf16.mxu0 %v1452
  %1982 = vmatpush1.bf16.msra.mxu0 %v1451
  %1983 = vmatprep.subr.bf16.mxu0 %v1456
  %1984 = vmatpush1.bf16.msra.mxu0 %v1455
  %1985 = vmatprep.subr.bf16.mxu0 %v1460
  %1986 = vmatpush1.bf16.msra.mxu0 %v1459
  %1987 = vmatprep.subr.bf16.mxu0 %v1464
  %1988 = vmatpush1.bf16.msra.mxu0 %v1463
  %1989 = vmatprep.subr.bf16.mxu0 %v1468
  %1990 = vmatpush1.bf16.msra.mxu0 %v1467
  %1991 = vmatprep.subr.bf16.mxu0 %v1472
  %1992 = vmatpush1.bf16.msra.mxu0 %v1471
  %1993 = vmatprep.subr.bf16.mxu0 %v1476
  %1994 = vmatpush1.bf16.msra.mxu0 %v1475
  %1995 = vmatprep.subr.bf16.mxu0 %v1480
  %1996 = vmatpush1.bf16.msra.mxu0 %v1479
  %1997 = vmatprep.mubr.bf16.mxu0 %v512
  %1998 = vmatmul.mubr.bf16.gmra.mrb[0].mxu0 %v511
  %v1999 = vpop.f32.mrb[0].mxu0
  %v2000 = vadd.f32 %v1887, %v1999
  %v2001 = vpop.f32.mrb[0].mxu0
  %v2002 = vadd.f32 %v1889, %v2001
  %v2003 = vpop.f32.mrb[0].mxu0
  %v2004 = vadd.f32 %v1891, %v2003
  %v2005 = vpop.f32.mrb[0].mxu0
  %v2006 = vadd.f32 %v1893, %v2005
  %2007 = vmatprep.mubr.bf16.mxu0 %v519
  %2008 = vmatmul.mubr.bf16.gmra.mrb[0].mxu0 %v518
  %v2009 = vpop.f32.mrb[0].mxu0
  %v2010 = vadd.f32 %v1897, %v2009
  %v2011 = vpop.f32.mrb[0].mxu0
  %v2012 = vadd.f32 %v1899, %v2011
  %v2013 = vpop.f32.mrb[0].mxu0
  %v2014 = vadd.f32 %v1901, %v2013
  %v2015 = vpop.f32.mrb[0].mxu0
  %v2016 = vadd.f32 %v1903, %v2015
  %2017 = vmatprep.mubr.bf16.mxu0 %v526
  %2018 = vmatmul.mubr.bf16.gmra.mrb[0].mxu0 %v525
  %v2019 = vpop.f32.mrb[0].mxu0
  %v2020 = vadd.f32 %v1907, %v2019
  %v2021 = vpop.f32.mrb[0].mxu0
  %v2022 = vadd.f32 %v1909, %v2021
  %v2023 = vpop.f32.mrb[0].mxu0
  %v2024 = vadd.f32 %v1911, %v2023
  %v2025 = vpop.f32.mrb[0].mxu0
  %v2026 = vadd.f32 %v1913, %v2025
  %2027 = vmatprep.mubr.bf16.mxu0 %v533
  %2028 = vmatmul.mubr.bf16.gmra.mrb[0].mxu0 %v532
  %v2029 = vpop.f32.mrb[0].mxu0
  %v2030 = vadd.f32 %v1917, %v2029
  %v2031 = vpop.f32.mrb[0].mxu0
  %v2032 = vadd.f32 %v1919, %v2031
  %v2033 = vpop.f32.mrb[0].mxu0
  %v2034 = vadd.f32 %v1921, %v2033
  %v2035 = vpop.f32.mrb[0].mxu0
  %v2036 = vadd.f32 %v1923, %v2035
  %2037 = vmatprep.mubr.bf16.mxu0 %v540
  %2038 = vmatmul.mubr.bf16.gmra.mrb[0].mxu0 %v539
  %v2039 = vpop.f32.mrb[0].mxu0
  %v2040 = vadd.f32 %v1927, %v2039
  %v2041 = vpop.f32.mrb[0].mxu0
  %v2042 = vadd.f32 %v1929, %v2041
  %v2043 = vpop.f32.mrb[0].mxu0
  %v2044 = vadd.f32 %v1931, %v2043
  %v2045 = vpop.f32.mrb[0].mxu0
  %v2046 = vadd.f32 %v1933, %v2045
  %2047 = vmatprep.mubr.bf16.mxu0 %v547
  %2048 = vmatmul.mubr.bf16.gmra.mrb[0].mxu0 %v546
  %v2049 = vpop.f32.mrb[0].mxu0
  %v2050 = vadd.f32 %v1937, %v2049
  %v2051 = vpop.f32.mrb[0].mxu0
  %v2052 = vadd.f32 %v1939, %v2051
  %v2053 = vpop.f32.mrb[0].mxu0
  %v2054 = vadd.f32 %v1941, %v2053
  %v2055 = vpop.f32.mrb[0].mxu0
  %v2056 = vadd.f32 %v1943, %v2055
  %2057 = vmatprep.mubr.bf16.mxu0 %v554
  %2058 = vmatmul.mubr.bf16.gmra.mrb[0].mxu0 %v553
  %v2059 = vpop.f32.mrb[0].mxu0
  %v2060 = vadd.f32 %v1947, %v2059
  %v2061 = vpop.f32.mrb[0].mxu0
  %v2062 = vadd.f32 %v1949, %v2061
  %v2063 = vpop.f32.mrb[0].mxu0
  %v2064 = vadd.f32 %v1951, %v2063
  %v2065 = vpop.f32.mrb[0].mxu0
  %v2066 = vadd.f32 %v1953, %v2065
  %2067 = vmatprep.mubr.bf16.mxu0 %v561
  %2068 = vmatmul.mubr.bf16.gmra.mrb[0].mxu0 %v560
  %v2069 = vpop.f32.mrb[0].mxu0
  %v2070 = vadd.f32 %v1957, %v2069
  %v2071 = vpop.f32.mrb[0].mxu0
  %v2072 = vadd.f32 %v1959, %v2071
  %v2073 = vpop.f32.mrb[0].mxu0
  %v2074 = vadd.f32 %v1961, %v2073
  %v2075 = vpop.f32.mrb[0].mxu0
  %v2076 = vadd.f32 %v1963, %v2075
  %2077 = vdwg.mxu0
  %2078 = vmatprep.subr.bf16.mxu0 %v1484
  %2079 = vmatpush1.bf16.msra.mxu0 %v1483
  %2080 = vmatprep.subr.bf16.mxu0 %v1488
  %2081 = vmatpush1.bf16.msra.mxu0 %v1487
  %2082 = vmatprep.subr.bf16.mxu0 %v1492
  %2083 = vmatpush1.bf16.msra.mxu0 %v1491
  %2084 = vmatprep.subr.bf16.mxu0 %v1496
  %2085 = vmatpush1.bf16.msra.mxu0 %v1495
  %2086 = vmatprep.subr.bf16.mxu0 %v1500
  %2087 = vmatpush1.bf16.msra.mxu0 %v1499
  %2088 = vmatprep.subr.bf16.mxu0 %v1504
  %2089 = vmatpush1.bf16.msra.mxu0 %v1503
  %2090 = vmatprep.subr.bf16.mxu0 %v1508
  %2091 = vmatpush1.bf16.msra.mxu0 %v1507
  %2092 = vmatprep.subr.bf16.mxu0 %v1512
  %2093 = vmatpush1.bf16.msra.mxu0 %v1511
  %2094 = vmatprep.subr.bf16.mxu0 0
  %2095 = vmatpush1.bf16.msra.mxu0 0
  %2096 = vmatprep.subr.bf16.mxu0 0
  %2097 = vmatpush1.bf16.msra.mxu0 0
  %2098 = vmatprep.subr.bf16.mxu0 0
  %2099 = vmatpush1.bf16.msra.mxu0 0
  %2100 = vmatprep.subr.bf16.mxu0 0
  %2101 = vmatpush1.bf16.msra.mxu0 0
  %2102 = vmatprep.subr.bf16.mxu0 0
  %2103 = vmatpush1.bf16.msra.mxu0 0
  %2104 = vmatprep.subr.bf16.mxu0 0
  %2105 = vmatpush1.bf16.msra.mxu0 0
  %2106 = vmatprep.subr.bf16.mxu0 0
  %2107 = vmatpush1.bf16.msra.mxu0 0
  %2108 = vmatprep.subr.bf16.mxu0 0
  %2109 = vmatpush1.bf16.msra.mxu0 0
  %2110 = vmatprep.mubr.bf16.mxu0 0
  %2111 = vmatmul.mubr.bf16.gmra.mrb[0].mxu0 %v513
  %v2112 = vpop.f32.mrb[0].mxu0
  %v2113 = vadd.f32 %v2000, %v2112
  %v2114 = vpop.f32.mrb[0].mxu0
  %v2115 = vadd.f32 %v2002, %v2114
  %v2116 = vpop.f32.mrb[0].mxu0
  %v2117 = vadd.f32 %v2004, %v2116
  %v2118 = vpop.f32.mrb[0].mxu0
  %v2119 = vadd.f32 %v2006, %v2118
  %2120 = vmatprep.mubr.bf16.mxu0 0
  %2121 = vmatmul.mubr.bf16.gmra.mrb[0].mxu0 %v520
  %v2122 = vpop.f32.mrb[0].mxu0
  %v2123 = vadd.f32 %v2010, %v2122
  %v2124 = vpop.f32.mrb[0].mxu0
  %v2125 = vadd.f32 %v2012, %v2124
  %v2126 = vpop.f32.mrb[0].mxu0
  %v2127 = vadd.f32 %v2014, %v2126
  %v2128 = vpop.f32.mrb[0].mxu0
  %v2129 = vadd.f32 %v2016, %v2128
  %2130 = vmatprep.mubr.bf16.mxu0 0
  %2131 = vmatmul.mubr.bf16.gmra.mrb[0].mxu0 %v527
  %v2132 = vpop.f32.mrb[0].mxu0
  %v2133 = vadd.f32 %v2020, %v2132
  %v2134 = vpop.f32.mrb[0].mxu0
  %v2135 = vadd.f32 %v2022, %v2134
  %v2136 = vpop.f32.mrb[0].mxu0
  %v2137 = vadd.f32 %v2024, %v2136
  %v2138 = vpop.f32.mrb[0].mxu0
  %v2139 = vadd.f32 %v2026, %v2138
  %2140 = vmatprep.mubr.bf16.mxu0 0
  %2141 = vmatmul.mubr.bf16.gmra.mrb[0].mxu0 %v534
  %v2142 = vpop.f32.mrb[0].mxu0
  %v2143 = vadd.f32 %v2030, %v2142
  %v2144 = vpop.f32.mrb[0].mxu0
  %v2145 = vadd.f32 %v2032, %v2144
  %v2146 = vpop.f32.mrb[0].mxu0
  %v2147 = vadd.f32 %v2034, %v2146
  %v2148 = vpop.f32.mrb[0].mxu0
  %v2149 = vadd.f32 %v2036, %v2148
  %2150 = vmatprep.mubr.bf16.mxu0 0
  %2151 = vmatmul.mubr.bf16.gmra.mrb[0].mxu0 %v541
  %v2152 = vpop.f32.mrb[0].mxu0
  %v2153 = vadd.f32 %v2040, %v2152
  %v2154 = vpop.f32.mrb[0].mxu0
  %v2155 = vadd.f32 %v2042, %v2154
  %v2156 = vpop.f32.mrb[0].mxu0
  %v2157 = vadd.f32 %v2044, %v2156
  %v2158 = vpop.f32.mrb[0].mxu0
  %v2159 = vadd.f32 %v2046, %v2158
  %2160 = vmatprep.mubr.bf16.mxu0 0
  %2161 = vmatmul.mubr.bf16.gmra.mrb[0].mxu0 %v548
  %v2162 = vpop.f32.mrb[0].mxu0
  %v2163 = vadd.f32 %v2050, %v2162
  %v2164 = vpop.f32.mrb[0].mxu0
  %v2165 = vadd.f32 %v2052, %v2164
  %v2166 = vpop.f32.mrb[0].mxu0
  %v2167 = vadd.f32 %v2054, %v2166
  %v2168 = vpop.f32.mrb[0].mxu0
  %v2169 = vadd.f32 %v2056, %v2168
  %2170 = vmatprep.mubr.bf16.mxu0 0
  %2171 = vmatmul.mubr.bf16.gmra.mrb[0].mxu0 %v555
  %v2172 = vpop.f32.mrb[0].mxu0
  %v2173 = vadd.f32 %v2060, %v2172
  %v2174 = vpop.f32.mrb[0].mxu0
  %v2175 = vadd.f32 %v2062, %v2174
  %v2176 = vpop.f32.mrb[0].mxu0
  %v2177 = vadd.f32 %v2064, %v2176
  %v2178 = vpop.f32.mrb[0].mxu0
  %v2179 = vadd.f32 %v2066, %v2178
  %2180 = vmatprep.mubr.bf16.mxu0 0
  %2181 = vmatmul.mubr.bf16.gmra.mrb[0].mxu0 %v562
  %v2182 = vpop.f32.mrb[0].mxu0
  %v2183 = vadd.f32 %v2070, %v2182
  %v2184 = vpop.f32.mrb[0].mxu0
  %v2185 = vadd.f32 %v2072, %v2184
  %v2186 = vpop.f32.mrb[0].mxu0
  %v2187 = vadd.f32 %v2074, %v2186
  %v2188 = vpop.f32.mrb[0].mxu0
  %v2189 = vadd.f32 %v2076, %v2188
  %2190 = vdwg.mxu0
  %2191 = vmatprep.subr.bf16.mxu0 %v1294
  %2192 = vmatpush1.bf16.msra.mxu0 %v1293
  %2193 = vmatprep.subr.bf16.mxu0 %v1298
  %2194 = vmatpush1.bf16.msra.mxu0 %v1297
  %2195 = vmatprep.subr.bf16.mxu0 %v1302
  %2196 = vmatpush1.bf16.msra.mxu0 %v1301
  %2197 = vmatprep.subr.bf16.mxu0 %v1306
  %2198 = vmatpush1.bf16.msra.mxu0 %v1305
  %2199 = vmatprep.subr.bf16.mxu0 %v1310
  %2200 = vmatpush1.bf16.msra.mxu0 %v1309
  %2201 = vmatprep.subr.bf16.mxu0 %v1314
  %2202 = vmatpush1.bf16.msra.mxu0 %v1313
  %2203 = vmatprep.subr.bf16.mxu0 %v1318
  %2204 = vmatpush1.bf16.msra.mxu0 %v1317
  %2205 = vmatprep.subr.bf16.mxu0 %v1322
  %2206 = vmatpush1.bf16.msra.mxu0 %v1321
  %2207 = vmatprep.subr.bf16.mxu0 %v1326
  %2208 = vmatpush1.bf16.msra.mxu0 %v1325
  %2209 = vmatprep.subr.bf16.mxu0 %v1330
  %2210 = vmatpush1.bf16.msra.mxu0 %v1329
  %2211 = vmatprep.subr.bf16.mxu0 %v1334
  %2212 = vmatpush1.bf16.msra.mxu0 %v1333
  %2213 = vmatprep.subr.bf16.mxu0 %v1338
  %2214 = vmatpush1.bf16.msra.mxu0 %v1337
  %2215 = vmatprep.subr.bf16.mxu0 %v1342
  %2216 = vmatpush1.bf16.msra.mxu0 %v1341
  %2217 = vmatprep.subr.bf16.mxu0 %v1346
  %2218 = vmatpush1.bf16.msra.mxu0 %v1345
  %2219 = vmatprep.subr.bf16.mxu0 %v1350
  %2220 = vmatpush1.bf16.msra.mxu0 %v1349
  %2221 = vmatprep.subr.bf16.mxu0 %v1354
  %2222 = vmatpush1.bf16.msra.mxu0 %v1353
  %2223 = vmatprep.mubr.bf16.mxu0 %v508
  %2224 = vmatmul.mubr.bf16.gmra.mrb[0].mxu0 %v507
  %v2225 = vpop.f32.mrb[0].mxu0
  %v2226 = vadd.f32 %v322, %v2225
  %v2227 = vpop.f32.mrb[0].mxu0
  %v2228 = vadd.f32 %v326, %v2227
  %v2229 = vpop.f32.mrb[0].mxu0
  %v2230 = vadd.f32 %v322, %v2229
  %v2231 = vpop.f32.mrb[0].mxu0
  %v2232 = vadd.f32 %v326, %v2231
  %2233 = vmatprep.mubr.bf16.mxu0 %v515
  %2234 = vmatmul.mubr.bf16.gmra.mrb[0].mxu0 %v514
  %v2235 = vpop.f32.mrb[0].mxu0
  %v2236 = vadd.f32 %v322, %v2235
  %v2237 = vpop.f32.mrb[0].mxu0
  %v2238 = vadd.f32 %v326, %v2237
  %v2239 = vpop.f32.mrb[0].mxu0
  %v2240 = vadd.f32 %v322, %v2239
  %v2241 = vpop.f32.mrb[0].mxu0
  %v2242 = vadd.f32 %v326, %v2241
  %2243 = vmatprep.mubr.bf16.mxu0 %v522
  %2244 = vmatmul.mubr.bf16.gmra.mrb[0].mxu0 %v521
  %v2245 = vpop.f32.mrb[0].mxu0
  %v2246 = vadd.f32 %v322, %v2245
  %v2247 = vpop.f32.mrb[0].mxu0
  %v2248 = vadd.f32 %v326, %v2247
  %v2249 = vpop.f32.mrb[0].mxu0
  %v2250 = vadd.f32 %v322, %v2249
  %v2251 = vpop.f32.mrb[0].mxu0
  %v2252 = vadd.f32 %v326, %v2251
  %2253 = vmatprep.mubr.bf16.mxu0 %v529
  %2254 = vmatmul.mubr.bf16.gmra.mrb[0].mxu0 %v528
  %v2255 = vpop.f32.mrb[0].mxu0
  %v2256 = vadd.f32 %v322, %v2255
  %v2257 = vpop.f32.mrb[0].mxu0
  %v2258 = vadd.f32 %v326, %v2257
  %v2259 = vpop.f32.mrb[0].mxu0
  %v2260 = vadd.f32 %v322, %v2259
  %v2261 = vpop.f32.mrb[0].mxu0
  %v2262 = vadd.f32 %v326, %v2261
  %2263 = vmatprep.mubr.bf16.mxu0 %v536
  %2264 = vmatmul.mubr.bf16.gmra.mrb[0].mxu0 %v535
  %v2265 = vpop.f32.mrb[0].mxu0
  %v2266 = vadd.f32 %v322, %v2265
  %v2267 = vpop.f32.mrb[0].mxu0
  %v2268 = vadd.f32 %v326, %v2267
  %v2269 = vpop.f32.mrb[0].mxu0
  %v2270 = vadd.f32 %v322, %v2269
  %v2271 = vpop.f32.mrb[0].mxu0
  %v2272 = vadd.f32 %v326, %v2271
  %2273 = vmatprep.mubr.bf16.mxu0 %v543
  %2274 = vmatmul.mubr.bf16.gmra.mrb[0].mxu0 %v542
  %v2275 = vpop.f32.mrb[0].mxu0
  %v2276 = vadd.f32 %v322, %v2275
  %v2277 = vpop.f32.mrb[0].mxu0
  %v2278 = vadd.f32 %v326, %v2277
  %v2279 = vpop.f32.mrb[0].mxu0
  %v2280 = vadd.f32 %v322, %v2279
  %v2281 = vpop.f32.mrb[0].mxu0
  %v2282 = vadd.f32 %v326, %v2281
  %2283 = vmatprep.mubr.bf16.mxu0 %v550
  %2284 = vmatmul.mubr.bf16.gmra.mrb[0].mxu0 %v549
  %v2285 = vpop.f32.mrb[0].mxu0
  %v2286 = vadd.f32 %v322, %v2285
  %v2287 = vpop.f32.mrb[0].mxu0
  %v2288 = vadd.f32 %v326, %v2287
  %v2289 = vpop.f32.mrb[0].mxu0
  %v2290 = vadd.f32 %v322, %v2289
  %v2291 = vpop.f32.mrb[0].mxu0
  %v2292 = vadd.f32 %v326, %v2291
  %2293 = vmatprep.mubr.bf16.mxu0 %v557
  %2294 = vmatmul.mubr.bf16.gmra.mrb[0].mxu0 %v556
  %v2295 = vpop.f32.mrb[0].mxu0
  %v2296 = vadd.f32 %v322, %v2295
  %v2297 = vpop.f32.mrb[0].mxu0
  %v2298 = vadd.f32 %v326, %v2297
  %v2299 = vpop.f32.mrb[0].mxu0
  %v2300 = vadd.f32 %v322, %v2299
  %v2301 = vpop.f32.mrb[0].mxu0
  %v2302 = vadd.f32 %v326, %v2301
  %2303 = vdwg.mxu0
  %2304 = vmatprep.subr.bf16.mxu0 %v1358
  %2305 = vmatpush1.bf16.msra.mxu0 %v1357
  %2306 = vmatprep.subr.bf16.mxu0 %v1362
  %2307 = vmatpush1.bf16.msra.mxu0 %v1361
  %2308 = vmatprep.subr.bf16.mxu0 %v1366
  %2309 = vmatpush1.bf16.msra.mxu0 %v1365
  %2310 = vmatprep.subr.bf16.mxu0 %v1370
  %2311 = vmatpush1.bf16.msra.mxu0 %v1369
  %2312 = vmatprep.subr.bf16.mxu0 %v1374
  %2313 = vmatpush1.bf16.msra.mxu0 %v1373
  %2314 = vmatprep.subr.bf16.mxu0 %v1378
  %2315 = vmatpush1.bf16.msra.mxu0 %v1377
  %2316 = vmatprep.subr.bf16.mxu0 %v1382
  %2317 = vmatpush1.bf16.msra.mxu0 %v1381
  %2318 = vmatprep.subr.bf16.mxu0 %v1386
  %2319 = vmatpush1.bf16.msra.mxu0 %v1385
  %2320 = vmatprep.subr.bf16.mxu0 %v1390
  %2321 = vmatpush1.bf16.msra.mxu0 %v1389
  %2322 = vmatprep.subr.bf16.mxu0 %v1394
  %2323 = vmatpush1.bf16.msra.mxu0 %v1393
  %2324 = vmatprep.subr.bf16.mxu0 %v1398
  %2325 = vmatpush1.bf16.msra.mxu0 %v1397
  %2326 = vmatprep.subr.bf16.mxu0 %v1402
  %2327 = vmatpush1.bf16.msra.mxu0 %v1401
  %2328 = vmatprep.subr.bf16.mxu0 %v1406
  %2329 = vmatpush1.bf16.msra.mxu0 %v1405
  %2330 = vmatprep.subr.bf16.mxu0 %v1410
  %2331 = vmatpush1.bf16.msra.mxu0 %v1409
  %2332 = vmatprep.subr.bf16.mxu0 %v1414
  %2333 = vmatpush1.bf16.msra.mxu0 %v1413
  %2334 = vmatprep.subr.bf16.mxu0 %v1418
  %2335 = vmatpush1.bf16.msra.mxu0 %v1417
  %2336 = vmatprep.mubr.bf16.mxu0 %v510
  %2337 = vmatmul.mubr.bf16.gmra.mrb[0].mxu0 %v509
  %v2338 = vpop.f32.mrb[0].mxu0
  %v2339 = vadd.f32 %v2226, %v2338
  %v2340 = vpop.f32.mrb[0].mxu0
  %v2341 = vadd.f32 %v2228, %v2340
  %v2342 = vpop.f32.mrb[0].mxu0
  %v2343 = vadd.f32 %v2230, %v2342
  %v2344 = vpop.f32.mrb[0].mxu0
  %v2345 = vadd.f32 %v2232, %v2344
  %2346 = vmatprep.mubr.bf16.mxu0 %v517
  %2347 = vmatmul.mubr.bf16.gmra.mrb[0].mxu0 %v516
  %v2348 = vpop.f32.mrb[0].mxu0
  %v2349 = vadd.f32 %v2236, %v2348
  %v2350 = vpop.f32.mrb[0].mxu0
  %v2351 = vadd.f32 %v2238, %v2350
  %v2352 = vpop.f32.mrb[0].mxu0
  %v2353 = vadd.f32 %v2240, %v2352
  %v2354 = vpop.f32.mrb[0].mxu0
  %v2355 = vadd.f32 %v2242, %v2354
  %2356 = vmatprep.mubr.bf16.mxu0 %v524
  %2357 = vmatmul.mubr.bf16.gmra.mrb[0].mxu0 %v523
  %v2358 = vpop.f32.mrb[0].mxu0
  %v2359 = vadd.f32 %v2246, %v2358
  %v2360 = vpop.f32.mrb[0].mxu0
  %v2361 = vadd.f32 %v2248, %v2360
  %v2362 = vpop.f32.mrb[0].mxu0
  %v2363 = vadd.f32 %v2250, %v2362
  %v2364 = vpop.f32.mrb[0].mxu0
  %v2365 = vadd.f32 %v2252, %v2364
  %2366 = vmatprep.mubr.bf16.mxu0 %v531
  %2367 = vmatmul.mubr.bf16.gmra.mrb[0].mxu0 %v530
  %v2368 = vpop.f32.mrb[0].mxu0
  %v2369 = vadd.f32 %v2256, %v2368
  %v2370 = vpop.f32.mrb[0].mxu0
  %v2371 = vadd.f32 %v2258, %v2370
  %v2372 = vpop.f32.mrb[0].mxu0
  %v2373 = vadd.f32 %v2260, %v2372
  %v2374 = vpop.f32.mrb[0].mxu0
  %v2375 = vadd.f32 %v2262, %v2374
  %2376 = vmatprep.mubr.bf16.mxu0 %v538
  %2377 = vmatmul.mubr.bf16.gmra.mrb[0].mxu0 %v537
  %v2378 = vpop.f32.mrb[0].mxu0
  %v2379 = vadd.f32 %v2266, %v2378
  %v2380 = vpop.f32.mrb[0].mxu0
  %v2381 = vadd.f32 %v2268, %v2380
  %v2382 = vpop.f32.mrb[0].mxu0
  %v2383 = vadd.f32 %v2270, %v2382
  %v2384 = vpop.f32.mrb[0].mxu0
  %v2385 = vadd.f32 %v2272, %v2384
  %2386 = vmatprep.mubr.bf16.mxu0 %v545
  %2387 = vmatmul.mubr.bf16.gmra.mrb[0].mxu0 %v544
  %v2388 = vpop.f32.mrb[0].mxu0
  %v2389 = vadd.f32 %v2276, %v2388
  %v2390 = vpop.f32.mrb[0].mxu0
  %v2391 = vadd.f32 %v2278, %v2390
  %v2392 = vpop.f32.mrb[0].mxu0
  %v2393 = vadd.f32 %v2280, %v2392
  %v2394 = vpop.f32.mrb[0].mxu0
  %v2395 = vadd.f32 %v2282, %v2394
  %2396 = vmatprep.mubr.bf16.mxu0 %v552
  %2397 = vmatmul.mubr.bf16.gmra.mrb[0].mxu0 %v551
  %v2398 = vpop.f32.mrb[0].mxu0
  %v2399 = vadd.f32 %v2286, %v2398
  %v2400 = vpop.f32.mrb[0].mxu0
  %v2401 = vadd.f32 %v2288, %v2400
  %v2402 = vpop.f32.mrb[0].mxu0
  %v2403 = vadd.f32 %v2290, %v2402
  %v2404 = vpop.f32.mrb[0].mxu0
  %v2405 = vadd.f32 %v2292, %v2404
  %2406 = vmatprep.mubr.bf16.mxu0 %v559
  %2407 = vmatmul.mubr.bf16.gmra.mrb[0].mxu0 %v558
  %v2408 = vpop.f32.mrb[0].mxu0
  %v2409 = vadd.f32 %v2296, %v2408
  %v2410 = vpop.f32.mrb[0].mxu0
  %v2411 = vadd.f32 %v2298, %v2410
  %v2412 = vpop.f32.mrb[0].mxu0
  %v2413 = vadd.f32 %v2300, %v2412
  %v2414 = vpop.f32.mrb[0].mxu0
  %v2415 = vadd.f32 %v2302, %v2414
  %2416 = vdwg.mxu0
  %2417 = vmatprep.subr.bf16.mxu0 %v1422
  %2418 = vmatpush1.bf16.msra.mxu0 %v1421
  %2419 = vmatprep.subr.bf16.mxu0 %v1426
  %2420 = vmatpush1.bf16.msra.mxu0 %v1425
  %2421 = vmatprep.subr.bf16.mxu0 %v1430
  %2422 = vmatpush1.bf16.msra.mxu0 %v1429
  %2423 = vmatprep.subr.bf16.mxu0 %v1434
  %2424 = vmatpush1.bf16.msra.mxu0 %v1433
  %2425 = vmatprep.subr.bf16.mxu0 %v1438
  %2426 = vmatpush1.bf16.msra.mxu0 %v1437
  %2427 = vmatprep.subr.bf16.mxu0 %v1442
  %2428 = vmatpush1.bf16.msra.mxu0 %v1441
  %2429 = vmatprep.subr.bf16.mxu0 %v1446
  %2430 = vmatpush1.bf16.msra.mxu0 %v1445
  %2431 = vmatprep.subr.bf16.mxu0 %v1450
  %2432 = vmatpush1.bf16.msra.mxu0 %v1449
  %2433 = vmatprep.subr.bf16.mxu0 %v1454
  %2434 = vmatpush1.bf16.msra.mxu0 %v1453
  %2435 = vmatprep.subr.bf16.mxu0 %v1458
  %2436 = vmatpush1.bf16.msra.mxu0 %v1457
  %2437 = vmatprep.subr.bf16.mxu0 %v1462
  %2438 = vmatpush1.bf16.msra.mxu0 %v1461
  %2439 = vmatprep.subr.bf16.mxu0 %v1466
  %2440 = vmatpush1.bf16.msra.mxu0 %v1465
  %2441 = vmatprep.subr.bf16.mxu0 %v1470
  %2442 = vmatpush1.bf16.msra.mxu0 %v1469
  %2443 = vmatprep.subr.bf16.mxu0 %v1474
  %2444 = vmatpush1.bf16.msra.mxu0 %v1473
  %2445 = vmatprep.subr.bf16.mxu0 %v1478
  %2446 = vmatpush1.bf16.msra.mxu0 %v1477
  %2447 = vmatprep.subr.bf16.mxu0 %v1482
  %2448 = vmatpush1.bf16.msra.mxu0 %v1481
  %2449 = vmatprep.mubr.bf16.mxu0 %v512
  %2450 = vmatmul.mubr.bf16.gmra.mrb[0].mxu0 %v511
  %v2451 = vpop.f32.mrb[0].mxu0
  %v2452 = vadd.f32 %v2339, %v2451
  %v2453 = vpop.f32.mrb[0].mxu0
  %v2454 = vadd.f32 %v2341, %v2453
  %v2455 = vpop.f32.mrb[0].mxu0
  %v2456 = vadd.f32 %v2343, %v2455
  %v2457 = vpop.f32.mrb[0].mxu0
  %v2458 = vadd.f32 %v2345, %v2457
  %2459 = vmatprep.mubr.bf16.mxu0 %v519
  %2460 = vmatmul.mubr.bf16.gmra.mrb[0].mxu0 %v518
  %v2461 = vpop.f32.mrb[0].mxu0
  %v2462 = vadd.f32 %v2349, %v2461
  %v2463 = vpop.f32.mrb[0].mxu0
  %v2464 = vadd.f32 %v2351, %v2463
  %v2465 = vpop.f32.mrb[0].mxu0
  %v2466 = vadd.f32 %v2353, %v2465
  %v2467 = vpop.f32.mrb[0].mxu0
  %v2468 = vadd.f32 %v2355, %v2467
  %2469 = vmatprep.mubr.bf16.mxu0 %v526
  %2470 = vmatmul.mubr.bf16.gmra.mrb[0].mxu0 %v525
  %v2471 = vpop.f32.mrb[0].mxu0
  %v2472 = vadd.f32 %v2359, %v2471
  %v2473 = vpop.f32.mrb[0].mxu0
  %v2474 = vadd.f32 %v2361, %v2473
  %v2475 = vpop.f32.mrb[0].mxu0
  %v2476 = vadd.f32 %v2363, %v2475
  %v2477 = vpop.f32.mrb[0].mxu0
  %v2478 = vadd.f32 %v2365, %v2477
  %2479 = vmatprep.mubr.bf16.mxu0 %v533
  %2480 = vmatmul.mubr.bf16.gmra.mrb[0].mxu0 %v532
  %v2481 = vpop.f32.mrb[0].mxu0
  %v2482 = vadd.f32 %v2369, %v2481
  %v2483 = vpop.f32.mrb[0].mxu0
  %v2484 = vadd.f32 %v2371, %v2483
  %v2485 = vpop.f32.mrb[0].mxu0
  %v2486 = vadd.f32 %v2373, %v2485
  %v2487 = vpop.f32.mrb[0].mxu0
  %v2488 = vadd.f32 %v2375, %v2487
  %2489 = vmatprep.mubr.bf16.mxu0 %v540
  %2490 = vmatmul.mubr.bf16.gmra.mrb[0].mxu0 %v539
  %v2491 = vpop.f32.mrb[0].mxu0
  %v2492 = vadd.f32 %v2379, %v2491
  %v2493 = vpop.f32.mrb[0].mxu0
  %v2494 = vadd.f32 %v2381, %v2493
  %v2495 = vpop.f32.mrb[0].mxu0
  %v2496 = vadd.f32 %v2383, %v2495
  %v2497 = vpop.f32.mrb[0].mxu0
  %v2498 = vadd.f32 %v2385, %v2497
  %2499 = vmatprep.mubr.bf16.mxu0 %v547
  %2500 = vmatmul.mubr.bf16.gmra.mrb[0].mxu0 %v546
  %v2501 = vpop.f32.mrb[0].mxu0
  %v2502 = vadd.f32 %v2389, %v2501
  %v2503 = vpop.f32.mrb[0].mxu0
  %v2504 = vadd.f32 %v2391, %v2503
  %v2505 = vpop.f32.mrb[0].mxu0
  %v2506 = vadd.f32 %v2393, %v2505
  %v2507 = vpop.f32.mrb[0].mxu0
  %v2508 = vadd.f32 %v2395, %v2507
  %2509 = vmatprep.mubr.bf16.mxu0 %v554
  %2510 = vmatmul.mubr.bf16.gmra.mrb[0].mxu0 %v553
  %v2511 = vpop.f32.mrb[0].mxu0
  %v2512 = vadd.f32 %v2399, %v2511
  %v2513 = vpop.f32.mrb[0].mxu0
  %v2514 = vadd.f32 %v2401, %v2513
  %v2515 = vpop.f32.mrb[0].mxu0
  %v2516 = vadd.f32 %v2403, %v2515
  %v2517 = vpop.f32.mrb[0].mxu0
  %v2518 = vadd.f32 %v2405, %v2517
  %2519 = vmatprep.mubr.bf16.mxu0 %v561
  %2520 = vmatmul.mubr.bf16.gmra.mrb[0].mxu0 %v560
  %v2521 = vpop.f32.mrb[0].mxu0
  %v2522 = vadd.f32 %v2409, %v2521
  %v2523 = vpop.f32.mrb[0].mxu0
  %v2524 = vadd.f32 %v2411, %v2523
  %v2525 = vpop.f32.mrb[0].mxu0
  %v2526 = vadd.f32 %v2413, %v2525
  %v2527 = vpop.f32.mrb[0].mxu0
  %v2528 = vadd.f32 %v2415, %v2527
  %2529 = vdwg.mxu0
  %2530 = vmatprep.subr.bf16.mxu0 %v1486
  %2531 = vmatpush1.bf16.msra.mxu0 %v1485
  %2532 = vmatprep.subr.bf16.mxu0 %v1490
  %2533 = vmatpush1.bf16.msra.mxu0 %v1489
  %2534 = vmatprep.subr.bf16.mxu0 %v1494
  %2535 = vmatpush1.bf16.msra.mxu0 %v1493
  %2536 = vmatprep.subr.bf16.mxu0 %v1498
  %2537 = vmatpush1.bf16.msra.mxu0 %v1497
  %2538 = vmatprep.subr.bf16.mxu0 %v1502
  %2539 = vmatpush1.bf16.msra.mxu0 %v1501
  %2540 = vmatprep.subr.bf16.mxu0 %v1506
  %2541 = vmatpush1.bf16.msra.mxu0 %v1505
  %2542 = vmatprep.subr.bf16.mxu0 %v1510
  %2543 = vmatpush1.bf16.msra.mxu0 %v1509
  %2544 = vmatprep.subr.bf16.mxu0 %v1514
  %2545 = vmatpush1.bf16.msra.mxu0 %v1513
  %2546 = vmatprep.subr.bf16.mxu0 0
  %2547 = vmatpush1.bf16.msra.mxu0 0
  %2548 = vmatprep.subr.bf16.mxu0 0
  %2549 = vmatpush1.bf16.msra.mxu0 0
  %2550 = vmatprep.subr.bf16.mxu0 0
  %2551 = vmatpush1.bf16.msra.mxu0 0
  %2552 = vmatprep.subr.bf16.mxu0 0
  %2553 = vmatpush1.bf16.msra.mxu0 0
  %2554 = vmatprep.subr.bf16.mxu0 0
  %2555 = vmatpush1.bf16.msra.mxu0 0
  %2556 = vmatprep.subr.bf16.mxu0 0
  %2557 = vmatpush1.bf16.msra.mxu0 0
  %2558 = vmatprep.subr.bf16.mxu0 0
  %2559 = vmatpush1.bf16.msra.mxu0 0
  %2560 = vmatprep.subr.bf16.mxu0 0
  %2561 = vmatpush1.bf16.msra.mxu0 0
  %2562 = vmatprep.mubr.bf16.mxu0 0
  %2563 = vmatmul.mubr.bf16.gmra.mrb[0].mxu0 %v513
  %v2564 = vpop.f32.mrb[0].mxu0
  %v2565 = vadd.f32 %v2452, %v2564
  %v2566 = vpop.f32.mrb[0].mxu0
  %v2567 = vadd.f32 %v2454, %v2566
  %v2568 = vpop.f32.mrb[0].mxu0
  %v2569 = vadd.f32 %v2456, %v2568
  %v2570 = vpop.f32.mrb[0].mxu0
  %v2571 = vadd.f32 %v2458, %v2570
  %2572 = vmatprep.mubr.bf16.mxu0 0
  %2573 = vmatmul.mubr.bf16.gmra.mrb[0].mxu0 %v520
  %v2574 = vpop.f32.mrb[0].mxu0
  %v2575 = vadd.f32 %v2462, %v2574
  %v2576 = vpop.f32.mrb[0].mxu0
  %v2577 = vadd.f32 %v2464, %v2576
  %v2578 = vpop.f32.mrb[0].mxu0
  %v2579 = vadd.f32 %v2466, %v2578
  %v2580 = vpop.f32.mrb[0].mxu0
  %v2581 = vadd.f32 %v2468, %v2580
  %2582 = vmatprep.mubr.bf16.mxu0 0
  %2583 = vmatmul.mubr.bf16.gmra.mrb[0].mxu0 %v527
  %v2584 = vpop.f32.mrb[0].mxu0
  %v2585 = vadd.f32 %v2472, %v2584
  %v2586 = vpop.f32.mrb[0].mxu0
  %v2587 = vadd.f32 %v2474, %v2586
  %v2588 = vpop.f32.mrb[0].mxu0
  %v2589 = vadd.f32 %v2476, %v2588
  %v2590 = vpop.f32.mrb[0].mxu0
  %v2591 = vadd.f32 %v2478, %v2590
  %2592 = vmatprep.mubr.bf16.mxu0 0
  %2593 = vmatmul.mubr.bf16.gmra.mrb[0].mxu0 %v534
  %v2594 = vpop.f32.mrb[0].mxu0
  %v2595 = vadd.f32 %v2482, %v2594
  %v2596 = vpop.f32.mrb[0].mxu0
  %v2597 = vadd.f32 %v2484, %v2596
  %v2598 = vpop.f32.mrb[0].mxu0
  %v2599 = vadd.f32 %v2486, %v2598
  %v2600 = vpop.f32.mrb[0].mxu0
  %v2601 = vadd.f32 %v2488, %v2600
  %2602 = vmatprep.mubr.bf16.mxu0 0
  %2603 = vmatmul.mubr.bf16.gmra.mrb[0].mxu0 %v541
  %v2604 = vpop.f32.mrb[0].mxu0
  %v2605 = vadd.f32 %v2492, %v2604
  %v2606 = vpop.f32.mrb[0].mxu0
  %v2607 = vadd.f32 %v2494, %v2606
  %v2608 = vpop.f32.mrb[0].mxu0
  %v2609 = vadd.f32 %v2496, %v2608
  %v2610 = vpop.f32.mrb[0].mxu0
  %v2611 = vadd.f32 %v2498, %v2610
  %2612 = vmatprep.mubr.bf16.mxu0 0
  %2613 = vmatmul.mubr.bf16.gmra.mrb[0].mxu0 %v548
  %v2614 = vpop.f32.mrb[0].mxu0
  %v2615 = vadd.f32 %v2502, %v2614
  %v2616 = vpop.f32.mrb[0].mxu0
  %v2617 = vadd.f32 %v2504, %v2616
  %v2618 = vpop.f32.mrb[0].mxu0
  %v2619 = vadd.f32 %v2506, %v2618
  %v2620 = vpop.f32.mrb[0].mxu0
  %v2621 = vadd.f32 %v2508, %v2620
  %2622 = vmatprep.mubr.bf16.mxu0 0
  %2623 = vmatmul.mubr.bf16.gmra.mrb[0].mxu0 %v555
  %v2624 = vpop.f32.mrb[0].mxu0
  %v2625 = vadd.f32 %v2512, %v2624
  %v2626 = vpop.f32.mrb[0].mxu0
  %v2627 = vadd.f32 %v2514, %v2626
  %v2628 = vpop.f32.mrb[0].mxu0
  %v2629 = vadd.f32 %v2516, %v2628
  %v2630 = vpop.f32.mrb[0].mxu0
  %v2631 = vadd.f32 %v2518, %v2630
  %2632 = vmatprep.mubr.bf16.mxu0 0
  %2633 = vmatmul.mubr.bf16.gmra.mrb[0].mxu0 %v562
  %v2634 = vpop.f32.mrb[0].mxu0
  %v2635 = vadd.f32 %v2522, %v2634
  %v2636 = vpop.f32.mrb[0].mxu0
  %v2637 = vadd.f32 %v2524, %v2636
  %v2638 = vpop.f32.mrb[0].mxu0
  %v2639 = vadd.f32 %v2526, %v2638
  %v2640 = vpop.f32.mrb[0].mxu0
  %v2641 = vadd.f32 %v2528, %v2640
  %2642 = vdwg.mxu0
  %v2643 = vmax.f32 %v2113, 0.0
  %v2644 = vmax.f32 %v2115, 0.0
  %v2645 = vmax.f32 %v2565, 0.0
  %v2646 = vmax.f32 %v2567, 0.0
  %v2647 = vmax.f32 %v2117, 0.0
  %v2648 = vmax.f32 %v2119, 0.0
  %v2649 = vmax.f32 %v2569, 0.0
  %v2650 = vmax.f32 %v2571, 0.0
  %v2651 = vmax.f32 %v2123, 0.0
  %v2652 = vmax.f32 %v2125, 0.0
  %v2653 = vmax.f32 %v2575, 0.0
  %v2654 = vmax.f32 %v2577, 0.0
  %v2655 = vmax.f32 %v2127, 0.0
  %v2656 = vmax.f32 %v2129, 0.0
  %v2657 = vmax.f32 %v2579, 0.0
  %v2658 = vmax.f32 %v2581, 0.0
  %v2659 = vmax.f32 %v2133, 0.0
  %v2660 = vmax.f32 %v2135, 0.0
  %v2661 = vmax.f32 %v2585, 0.0
  %v2662 = vmax.f32 %v2587, 0.0
  %v2663 = vmax.f32 %v2137, 0.0
  %v2664 = vmax.f32 %v2139, 0.0
  %v2665 = vmax.f32 %v2589, 0.0
  %v2666 = vmax.f32 %v2591, 0.0
  %v2667 = vmax.f32 %v2143, 0.0
  %v2668 = vmax.f32 %v2145, 0.0
  %v2669 = vmax.f32 %v2595, 0.0
  %v2670 = vmax.f32 %v2597, 0.0
  %v2671 = vmax.f32 %v2147, 0.0
  %v2672 = vmax.f32 %v2149, 0.0
  %v2673 = vmax.f32 %v2599, 0.0
  %v2674 = vmax.f32 %v2601, 0.0
  %v2675 = vmax.f32 %v2153, 0.0
  %v2676 = vmax.f32 %v2155, 0.0
  %v2677 = vmax.f32 %v2605, 0.0
  %v2678 = vmax.f32 %v2607, 0.0
  %v2679 = vmax.f32 %v2157, 0.0
  %v2680 = vmax.f32 %v2159, 0.0
  %v2681 = vmax.f32 %v2609, 0.0
  %v2682 = vmax.f32 %v2611, 0.0
  %v2683 = vmax.f32 %v2163, 0.0
  %v2684 = vmax.f32 %v2165, 0.0
  %v2685 = vmax.f32 %v2615, 0.0
  %v2686 = vmax.f32 %v2617, 0.0
  %v2687 = vmax.f32 %v2167, 0.0
  %v2688 = vmax.f32 %v2169, 0.0
  %v2689 = vmax.f32 %v2619, 0.0
  %v2690 = vmax.f32 %v2621, 0.0
  %v2691 = vmax.f32 %v2173, 0.0
  %v2692 = vmax.f32 %v2175, 0.0
  %v2693 = vmax.f32 %v2625, 0.0
  %v2694 = vmax.f32 %v2627, 0.0
  %v2695 = vmax.f32 %v2177, 0.0
  %v2696 = vmax.f32 %v2179, 0.0
  %v2697 = vmax.f32 %v2629, 0.0
  %v2698 = vmax.f32 %v2631, 0.0
  %v2699 = vmax.f32 %v2183, 0.0
  %v2700 = vmax.f32 %v2185, 0.0
  %v2701 = vmax.f32 %v2635, 0.0
  %v2702 = vmax.f32 %v2637, 0.0
  %v2703 = vmax.f32 %v2187, 0.0
  %v2704 = vmax.f32 %v2189, 0.0
  %v2705 = vmax.f32 %v2639, 0.0
  %v2706 = vmax.f32 %v2641, 0.0
  %v2707 = vpack.c.bf16 %v2647, %v2643
  %v2708 = vpack.c.bf16 %v2648, %v2644
  %v2709 = vpack.c.bf16 %v2649, %v2645
  %v2710 = vpack.c.bf16 %v2650, %v2646
  %v2711 = vpack.c.bf16 %v2655, %v2651
  %v2712 = vpack.c.bf16 %v2656, %v2652
  %v2713 = vpack.c.bf16 %v2657, %v2653
  %v2714 = vpack.c.bf16 %v2658, %v2654
  %v2715 = vpack.c.bf16 %v2663, %v2659
  %v2716 = vpack.c.bf16 %v2664, %v2660
  %v2717 = vpack.c.bf16 %v2665, %v2661
  %v2718 = vpack.c.bf16 %v2666, %v2662
  %v2719 = vpack.c.bf16 %v2671, %v2667
  %v2720 = vpack.c.bf16 %v2672, %v2668
  %v2721 = vpack.c.bf16 %v2673, %v2669
  %v2722 = vpack.c.bf16 %v2674, %v2670
  %v2723 = vpack.c.bf16 %v2679, %v2675
  %v2724 = vpack.c.bf16 %v2680, %v2676
  %v2725 = vpack.c.bf16 %v2681, %v2677
  %v2726 = vpack.c.bf16 %v2682, %v2678
  %v2727 = vpack.c.bf16 %v2687, %v2683
  %v2728 = vpack.c.bf16 %v2688, %v2684
  %v2729 = vpack.c.bf16 %v2689, %v2685
  %v2730 = vpack.c.bf16 %v2690, %v2686
  %v2731 = vpack.c.bf16 %v2695, %v2691
  %v2732 = vpack.c.bf16 %v2696, %v2692
  %v2733 = vpack.c.bf16 %v2697, %v2693
  %v2734 = vpack.c.bf16 %v2698, %v2694
  %v2735 = vpack.c.bf16 %v2703, %v2699
  %v2736 = vpack.c.bf16 %v2704, %v2700
  %v2737 = vpack.c.bf16 %v2705, %v2701
  %v2738 = vpack.c.bf16 %v2706, %v2702
  %v2739 = vld [vmem:[%s3] sm:$0xf]
  %v2740 = vld [vmem:[%s3 + $0x4] sm:$0xf]
  %v2741 = vld [vmem:[%s3 + $0x8] sm:$0xf]
  %v2742 = vld [vmem:[%s3 + $0xc] sm:$0xf]
  %v2743 = vld [vmem:[%s3 + $0x10] sm:$0xf]
  %v2744 = vld [vmem:[%s3 + $0x14] sm:$0xf]
  %v2745 = vld [vmem:[%s3 + $0x18] sm:$0xf]
  %v2746 = vld [vmem:[%s3 + $0x1c] sm:$0xf]
  %v2747 = vld [vmem:[%s3 + $0x20] sm:$0xf]
  %v2748 = vld [vmem:[%s3 + $0x24] sm:$0xf]
  %v2749 = vld [vmem:[%s3 + $0x28] sm:$0xf]
  %v2750 = vld [vmem:[%s3 + $0x2c] sm:$0xf]
  %v2751 = vld [vmem:[%s3 + $0x30] sm:$0xf]
  %v2752 = vld [vmem:[%s3 + $0x34] sm:$0xf]
  %v2753 = vld [vmem:[%s3 + $0x38] sm:$0xf]
  %v2754 = vld [vmem:[%s3 + $0x3c] sm:$0xf]
  %v2755 = vld [vmem:[%s3 + $0x40] sm:$0xf]
  %v2756 = vld [vmem:[%s3 + $0x44] sm:$0xf]
  %v2757 = vld [vmem:[%s3 + $0x48] sm:$0xf]
  %v2758 = vld [vmem:[%s3 + $0x4c] sm:$0xf]
  %v2759 = vld [vmem:[%s3 + $0x50] sm:$0xf]
  %v2760 = vld [vmem:[%s3 + $0x54] sm:$0xf]
  %v2761 = vld [vmem:[%s3 + $0x58] sm:$0xf]
  %v2762 = vld [vmem:[%s3 + $0x5c] sm:$0xf]
  %v2763 = vld [vmem:[%s3 + $0x60] sm:$0xf]
  %v2764 = vld [vmem:[%s3 + $0x64] sm:$0xf]
  %v2765 = vld [vmem:[%s3 + $0x68] sm:$0xf]
  %v2766 = vld [vmem:[%s3 + $0x6c] sm:$0xf]
  %v2767 = vld [vmem:[%s3 + $0x70] sm:$0xf]
  %v2768 = vld [vmem:[%s3 + $0x74] sm:$0xf]
  %v2769 = vld [vmem:[%s3 + $0x78] sm:$0xf]
  %v2770 = vld [vmem:[%s3 + $0x7c] sm:$0xf]
  %v2771 = vld [vmem:[%s3 + $0x80] sm:$0xf]
  %v2772 = vld [vmem:[%s3 + $0x84] sm:$0xf]
  %v2773 = vld [vmem:[%s3 + $0x88] sm:$0xf]
  %v2774 = vld [vmem:[%s3 + $0x8c] sm:$0xf]
  %v2775 = vld [vmem:[%s3 + $0x90] sm:$0xf]
  %v2776 = vld [vmem:[%s3 + $0x94] sm:$0xf]
  %v2777 = vld [vmem:[%s3 + $0x98] sm:$0xf]
  %v2778 = vld [vmem:[%s3 + $0x9c] sm:$0xf]
  %v2779 = vld [vmem:[%s3 + $0xa0] sm:$0xf]
  %v2780 = vld [vmem:[%s3 + $0xa4] sm:$0xf]
  %v2781 = vld [vmem:[%s3 + $0xa8] sm:$0xf]
  %v2782 = vld [vmem:[%s3 + $0xac] sm:$0xf]
  %v2783 = vld [vmem:[%s3 + $0xb0] sm:$0xf]
  %v2784 = vld [vmem:[%s3 + $0xb4] sm:$0xf]
  %v2785 = vld [vmem:[%s3 + $0xb8] sm:$0xf]
  %v2786 = vld [vmem:[%s3 + $0xbc] sm:$0xf]
  %v2787 = vld [vmem:[%s3 + $0xc0] sm:$0xf]
  %v2788 = vld [vmem:[%s3 + $0xc4] sm:$0xf]
  %v2789 = vld [vmem:[%s3 + $0xc8] sm:$0xf]
  %v2790 = vld [vmem:[%s3 + $0xcc] sm:$0xf]
  %v2791 = vld [vmem:[%s3 + $0xd0] sm:$0xf]
  %v2792 = vld [vmem:[%s3 + $0xd4] sm:$0xf]
  %v2793 = vld [vmem:[%s3 + $0xd8] sm:$0xf]
  %v2794 = vld [vmem:[%s3 + $0xdc] sm:$0xf]
  %v2795 = vld [vmem:[%s3 + $0xe0] sm:$0xf]
  %v2796 = vld [vmem:[%s3 + $0xe4] sm:$0xf]
  %v2797 = vld [vmem:[%s3 + $0xe8] sm:$0xf]
  %v2798 = vld [vmem:[%s3 + $0xec] sm:$0xf]
  %v2799 = vld [vmem:[%s3 + $0xf0] sm:$0xf]
  %v2800 = vld [vmem:[%s3 + $0xf4] sm:$0xf]
  %v2801 = vld [vmem:[%s3 + $0xf8] sm:$0xf]
  %v2802 = vld [vmem:[%s3 + $0xfc] sm:$0xf]
  %v2803 = vld [vmem:[%s4] sm:$0x1]
  %v2805 = vlaneseq
  %v2806 = vshrl.u32 %v2805, 7
  %v2807 = vsub.s32 0, %v2806
  %v2808 = vrot.slane %v2803, %v2807
  %v2874 = vunpack.c.l.b16 %v2739
  %v2875 = vunpack.c.l.b16 %v2740
  %v2876 = vunpack.c.l.b16 %v2741
  %v2877 = vunpack.c.l.b16 %v2742
  %v2878 = vunpack.c.l.b16 %v2743
  %v2879 = vunpack.c.l.b16 %v2744
  %v2880 = vunpack.c.l.b16 %v2745
  %v2881 = vunpack.c.l.b16 %v2746
  %v2882 = vunpack.c.l.b16 %v2747
  %v2883 = vunpack.c.l.b16 %v2748
  %v2884 = vunpack.c.l.b16 %v2749
  %v2885 = vunpack.c.l.b16 %v2750
  %v2886 = vunpack.c.l.b16 %v2751
  %v2887 = vunpack.c.l.b16 %v2752
  %v2888 = vunpack.c.l.b16 %v2753
  %v2889 = vunpack.c.l.b16 %v2754
  %v2890 = vunpack.c.l.b16 %v2755
  %v2891 = vunpack.c.l.b16 %v2756
  %v2892 = vunpack.c.l.b16 %v2757
  %v2893 = vunpack.c.l.b16 %v2758
  %v2894 = vunpack.c.l.b16 %v2759
  %v2895 = vunpack.c.l.b16 %v2760
  %v2896 = vunpack.c.l.b16 %v2761
  %v2897 = vunpack.c.l.b16 %v2762
  %v2898 = vunpack.c.l.b16 %v2763
  %v2899 = vunpack.c.l.b16 %v2764
  %v2900 = vunpack.c.l.b16 %v2765
  %v2901 = vunpack.c.l.b16 %v2766
  %v2902 = vunpack.c.l.b16 %v2767
  %v2903 = vunpack.c.l.b16 %v2768
  %v2904 = vunpack.c.l.b16 %v2769
  %v2905 = vunpack.c.l.b16 %v2770
  %v2906 = vunpack.c.l.b16 %v2771
  %v2907 = vunpack.c.l.b16 %v2772
  %v2908 = vunpack.c.l.b16 %v2773
  %v2909 = vunpack.c.l.b16 %v2774
  %v2910 = vunpack.c.l.b16 %v2775
  %v2911 = vunpack.c.l.b16 %v2776
  %v2912 = vunpack.c.l.b16 %v2777
  %v2913 = vunpack.c.l.b16 %v2778
  %v2914 = vunpack.c.l.b16 %v2779
  %v2915 = vunpack.c.l.b16 %v2780
  %v2916 = vunpack.c.l.b16 %v2781
  %v2917 = vunpack.c.l.b16 %v2782
  %v2918 = vunpack.c.l.b16 %v2783
  %v2919 = vunpack.c.l.b16 %v2784
  %v2920 = vunpack.c.l.b16 %v2785
  %v2921 = vunpack.c.l.b16 %v2786
  %v2922 = vunpack.c.l.b16 %v2787
  %v2923 = vunpack.c.l.b16 %v2788
  %v2924 = vunpack.c.l.b16 %v2789
  %v2925 = vunpack.c.l.b16 %v2790
  %v2926 = vunpack.c.l.b16 %v2791
  %v2927 = vunpack.c.l.b16 %v2792
  %v2928 = vunpack.c.l.b16 %v2793
  %v2929 = vunpack.c.l.b16 %v2794
  %v2930 = vunpack.c.l.b16 %v2795
  %v2931 = vunpack.c.l.b16 %v2796
  %v2932 = vunpack.c.l.b16 %v2797
  %v2933 = vunpack.c.l.b16 %v2798
  %v2934 = vunpack.c.l.b16 %v2799
  %v2935 = vunpack.c.l.b16 %v2800
  %v2936 = vunpack.c.l.b16 %v2801
  %v2937 = vunpack.c.l.b16 %v2802
  %v2938 = vpack.c.b16 %v2875, %v2874
  %v2939 = vpack.c.b16 %v2877, %v2876
  %v2940 = vpack.c.b16 %v2879, %v2878
  %v2941 = vpack.c.b16 %v2881, %v2880
  %v2942 = vpack.c.b16 %v2883, %v2882
  %v2943 = vpack.c.b16 %v2885, %v2884
  %v2944 = vpack.c.b16 %v2887, %v2886
  %v2945 = vpack.c.b16 %v2889, %v2888
  %v2946 = vpack.c.b16 %v2891, %v2890
  %v2947 = vpack.c.b16 %v2893, %v2892
  %v2948 = vpack.c.b16 %v2895, %v2894
  %v2949 = vpack.c.b16 %v2897, %v2896
  %v2950 = vpack.c.b16 %v2899, %v2898
  %v2951 = vpack.c.b16 %v2901, %v2900
  %v2952 = vpack.c.b16 %v2903, %v2902
  %v2953 = vpack.c.b16 %v2905, %v2904
  %v2954 = vpack.c.b16 %v2907, %v2906
  %v2955 = vpack.c.b16 %v2909, %v2908
  %v2956 = vpack.c.b16 %v2911, %v2910
  %v2957 = vpack.c.b16 %v2913, %v2912
  %v2958 = vpack.c.b16 %v2915, %v2914
  %v2959 = vpack.c.b16 %v2917, %v2916
  %v2960 = vpack.c.b16 %v2919, %v2918
  %v2961 = vpack.c.b16 %v2921, %v2920
  %v2962 = vpack.c.b16 %v2923, %v2922
  %v2963 = vpack.c.b16 %v2925, %v2924
  %v2964 = vpack.c.b16 %v2927, %v2926
  %v2965 = vpack.c.b16 %v2929, %v2928
  %v2966 = vpack.c.b16 %v2931, %v2930
  %v2967 = vpack.c.b16 %v2933, %v2932
  %v2968 = vpack.c.b16 %v2935, %v2934
  %v2969 = vpack.c.b16 %v2937, %v2936
  %3002 = vmatprep.subr.bf16.mxu0 0
  %3003 = vmatpush1.bf16.msra.mxu0 %v2938
  %3004 = vmatprep.subr.bf16.mxu0 0
  %3005 = vmatpush1.bf16.msra.mxu0 %v2939
  %3006 = vmatprep.subr.bf16.mxu0 0
  %3007 = vmatpush1.bf16.msra.mxu0 %v2940
  %3008 = vmatprep.subr.bf16.mxu0 0
  %3009 = vmatpush1.bf16.msra.mxu0 %v2941
  %3010 = vmatprep.subr.bf16.mxu0 0
  %3011 = vmatpush1.bf16.msra.mxu0 %v2942
  %3012 = vmatprep.subr.bf16.mxu0 0
  %3013 = vmatpush1.bf16.msra.mxu0 %v2943
  %3014 = vmatprep.subr.bf16.mxu0 0
  %3015 = vmatpush1.bf16.msra.mxu0 %v2944
  %3016 = vmatprep.subr.bf16.mxu0 0
  %3017 = vmatpush1.bf16.msra.mxu0 %v2945
  %3018 = vmatprep.subr.bf16.mxu0 0
  %3019 = vmatpush1.bf16.msra.mxu0 %v2946
  %3020 = vmatprep.subr.bf16.mxu0 0
  %3021 = vmatpush1.bf16.msra.mxu0 %v2947
  %3022 = vmatprep.subr.bf16.mxu0 0
  %3023 = vmatpush1.bf16.msra.mxu0 %v2948
  %3024 = vmatprep.subr.bf16.mxu0 0
  %3025 = vmatpush1.bf16.msra.mxu0 %v2949
  %3026 = vmatprep.subr.bf16.mxu0 0
  %3027 = vmatpush1.bf16.msra.mxu0 %v2950
  %3028 = vmatprep.subr.bf16.mxu0 0
  %3029 = vmatpush1.bf16.msra.mxu0 %v2951
  %3030 = vmatprep.subr.bf16.mxu0 0
  %3031 = vmatpush1.bf16.msra.mxu0 %v2952
  %3032 = vmatprep.subr.bf16.mxu0 0
  %3033 = vmatpush1.bf16.msra.mxu0 %v2953
  %3034 = vmatprep.mubr.bf16.mxu0 %v2708
  %3035 = vmatmul.mubr.bf16.gmra.mrb[0].mxu0 %v2707
  %v3036 = vpop.f32.mrb[0].mxu0
  %v3037 = vadd.f32 %v2808, %v3036
  %v3038 = vpop.f32.mrb[0].mxu0
  %v3039 = vpop.f32.mrb[0].mxu0
  %v3040 = vadd.f32 %v2808, %v3039
  %v3041 = vpop.f32.mrb[0].mxu0
  %3042 = vmatprep.mubr.bf16.mxu0 %v2712
  %3043 = vmatmul.mubr.bf16.gmra.mrb[0].mxu0 %v2711
  %v3044 = vpop.f32.mrb[0].mxu0
  %v3045 = vadd.f32 %v2808, %v3044
  %v3046 = vpop.f32.mrb[0].mxu0
  %v3047 = vpop.f32.mrb[0].mxu0
  %v3048 = vadd.f32 %v2808, %v3047
  %v3049 = vpop.f32.mrb[0].mxu0
  %3050 = vmatprep.mubr.bf16.mxu0 %v2716
  %3051 = vmatmul.mubr.bf16.gmra.mrb[0].mxu0 %v2715
  %v3052 = vpop.f32.mrb[0].mxu0
  %v3053 = vadd.f32 %v2808, %v3052
  %v3054 = vpop.f32.mrb[0].mxu0
  %v3055 = vpop.f32.mrb[0].mxu0
  %v3056 = vadd.f32 %v2808, %v3055
  %v3057 = vpop.f32.mrb[0].mxu0
  %3058 = vmatprep.mubr.bf16.mxu0 %v2720
  %3059 = vmatmul.mubr.bf16.gmra.mrb[0].mxu0 %v2719
  %v3060 = vpop.f32.mrb[0].mxu0
  %v3061 = vadd.f32 %v2808, %v3060
  %v3062 = vpop.f32.mrb[0].mxu0
  %v3063 = vpop.f32.mrb[0].mxu0
  %v3064 = vadd.f32 %v2808, %v3063
  %v3065 = vpop.f32.mrb[0].mxu0
  %3066 = vmatprep.mubr.bf16.mxu0 %v2724
  %3067 = vmatmul.mubr.bf16.gmra.mrb[0].mxu0 %v2723
  %v3068 = vpop.f32.mrb[0].mxu0
  %v3069 = vadd.f32 %v2808, %v3068
  %v3070 = vpop.f32.mrb[0].mxu0
  %v3071 = vpop.f32.mrb[0].mxu0
  %v3072 = vadd.f32 %v2808, %v3071
  %v3073 = vpop.f32.mrb[0].mxu0
  %3074 = vmatprep.mubr.bf16.mxu0 %v2728
  %3075 = vmatmul.mubr.bf16.gmra.mrb[0].mxu0 %v2727
  %v3076 = vpop.f32.mrb[0].mxu0
  %v3077 = vadd.f32 %v2808, %v3076
  %v3078 = vpop.f32.mrb[0].mxu0
  %v3079 = vpop.f32.mrb[0].mxu0
  %v3080 = vadd.f32 %v2808, %v3079
  %v3081 = vpop.f32.mrb[0].mxu0
  %3082 = vmatprep.mubr.bf16.mxu0 %v2732
  %3083 = vmatmul.mubr.bf16.gmra.mrb[0].mxu0 %v2731
  %v3084 = vpop.f32.mrb[0].mxu0
  %v3085 = vadd.f32 %v2808, %v3084
  %v3086 = vpop.f32.mrb[0].mxu0
  %v3087 = vpop.f32.mrb[0].mxu0
  %v3088 = vadd.f32 %v2808, %v3087
  %v3089 = vpop.f32.mrb[0].mxu0
  %3090 = vmatprep.mubr.bf16.mxu0 %v2736
  %3091 = vmatmul.mubr.bf16.gmra.mrb[0].mxu0 %v2735
  %v3092 = vpop.f32.mrb[0].mxu0
  %v3093 = vadd.f32 %v2808, %v3092
  %v3094 = vpop.f32.mrb[0].mxu0
  %v3095 = vpop.f32.mrb[0].mxu0
  %v3096 = vadd.f32 %v2808, %v3095
  %v3097 = vpop.f32.mrb[0].mxu0
  %3098 = vdwg.mxu0
  %3099 = vmatprep.subr.bf16.mxu0 0
  %3100 = vmatpush1.bf16.msra.mxu0 %v2954
  %3101 = vmatprep.subr.bf16.mxu0 0
  %3102 = vmatpush1.bf16.msra.mxu0 %v2955
  %3103 = vmatprep.subr.bf16.mxu0 0
  %3104 = vmatpush1.bf16.msra.mxu0 %v2956
  %3105 = vmatprep.subr.bf16.mxu0 0
  %3106 = vmatpush1.bf16.msra.mxu0 %v2957
  %3107 = vmatprep.subr.bf16.mxu0 0
  %3108 = vmatpush1.bf16.msra.mxu0 %v2958
  %3109 = vmatprep.subr.bf16.mxu0 0
  %3110 = vmatpush1.bf16.msra.mxu0 %v2959
  %3111 = vmatprep.subr.bf16.mxu0 0
  %3112 = vmatpush1.bf16.msra.mxu0 %v2960
  %3113 = vmatprep.subr.bf16.mxu0 0
  %3114 = vmatpush1.bf16.msra.mxu0 %v2961
  %3115 = vmatprep.subr.bf16.mxu0 0
  %3116 = vmatpush1.bf16.msra.mxu0 %v2962
  %3117 = vmatprep.subr.bf16.mxu0 0
  %3118 = vmatpush1.bf16.msra.mxu0 %v2963
  %3119 = vmatprep.subr.bf16.mxu0 0
  %3120 = vmatpush1.bf16.msra.mxu0 %v2964
  %3121 = vmatprep.subr.bf16.mxu0 0
  %3122 = vmatpush1.bf16.msra.mxu0 %v2965
  %3123 = vmatprep.subr.bf16.mxu0 0
  %3124 = vmatpush1.bf16.msra.mxu0 %v2966
  %3125 = vmatprep.subr.bf16.mxu0 0
  %3126 = vmatpush1.bf16.msra.mxu0 %v2967
  %3127 = vmatprep.subr.bf16.mxu0 0
  %3128 = vmatpush1.bf16.msra.mxu0 %v2968
  %3129 = vmatprep.subr.bf16.mxu0 0
  %3130 = vmatpush1.bf16.msra.mxu0 %v2969
  %3131 = vmatprep.mubr.bf16.mxu0 %v2710
  %3132 = vmatmul.mubr.bf16.gmra.mrb[0].mxu0 %v2709
  %v3133 = vpop.f32.mrb[0].mxu0
  %v3134 = vadd.f32 %v3037, %v3133
  %v3135 = vpop.f32.mrb[0].mxu0
  %v3136 = vpop.f32.mrb[0].mxu0
  %v3137 = vadd.f32 %v3040, %v3136
  %v3138 = vpop.f32.mrb[0].mxu0
  %3139 = vmatprep.mubr.bf16.mxu0 %v2714
  %3140 = vmatmul.mubr.bf16.gmra.mrb[0].mxu0 %v2713
  %v3141 = vpop.f32.mrb[0].mxu0
  %v3142 = vadd.f32 %v3045, %v3141
  %v3143 = vpop.f32.mrb[0].mxu0
  %v3144 = vpop.f32.mrb[0].mxu0
  %v3145 = vadd.f32 %v3048, %v3144
  %v3146 = vpop.f32.mrb[0].mxu0
  %3147 = vmatprep.mubr.bf16.mxu0 %v2718
  %3148 = vmatmul.mubr.bf16.gmra.mrb[0].mxu0 %v2717
  %v3149 = vpop.f32.mrb[0].mxu0
  %v3150 = vadd.f32 %v3053, %v3149
  %v3151 = vpop.f32.mrb[0].mxu0
  %v3152 = vpop.f32.mrb[0].mxu0
  %v3153 = vadd.f32 %v3056, %v3152
  %v3154 = vpop.f32.mrb[0].mxu0
  %3155 = vmatprep.mubr.bf16.mxu0 %v2722
  %3156 = vmatmul.mubr.bf16.gmra.mrb[0].mxu0 %v2721
  %v3157 = vpop.f32.mrb[0].mxu0
  %v3158 = vadd.f32 %v3061, %v3157
  %v3159 = vpop.f32.mrb[0].mxu0
  %v3160 = vpop.f32.mrb[0].mxu0
  %v3161 = vadd.f32 %v3064, %v3160
  %v3162 = vpop.f32.mrb[0].mxu0
  %3163 = vmatprep.mubr.bf16.mxu0 %v2726
  %3164 = vmatmul.mubr.bf16.gmra.mrb[0].mxu0 %v2725
  %v3165 = vpop.f32.mrb[0].mxu0
  %v3166 = vadd.f32 %v3069, %v3165
  %v3167 = vpop.f32.mrb[0].mxu0
  %v3168 = vpop.f32.mrb[0].mxu0
  %v3169 = vadd.f32 %v3072, %v3168
  %v3170 = vpop.f32.mrb[0].mxu0
  %3171 = vmatprep.mubr.bf16.mxu0 %v2730
  %3172 = vmatmul.mubr.bf16.gmra.mrb[0].mxu0 %v2729
  %v3173 = vpop.f32.mrb[0].mxu0
  %v3174 = vadd.f32 %v3077, %v3173
  %v3175 = vpop.f32.mrb[0].mxu0
  %v3176 = vpop.f32.mrb[0].mxu0
  %v3177 = vadd.f32 %v3080, %v3176
  %v3178 = vpop.f32.mrb[0].mxu0
  %3179 = vmatprep.mubr.bf16.mxu0 %v2734
  %3180 = vmatmul.mubr.bf16.gmra.mrb[0].mxu0 %v2733
  %v3181 = vpop.f32.mrb[0].mxu0
  %v3182 = vadd.f32 %v3085, %v3181
  %v3183 = vpop.f32.mrb[0].mxu0
  %v3184 = vpop.f32.mrb[0].mxu0
  %v3185 = vadd.f32 %v3088, %v3184
  %v3186 = vpop.f32.mrb[0].mxu0
  %3187 = vmatprep.mubr.bf16.mxu0 %v2738
  %3188 = vmatmul.mubr.bf16.gmra.mrb[0].mxu0 %v2737
  %v3189 = vpop.f32.mrb[0].mxu0
  %v3190 = vadd.f32 %v3093, %v3189
  %v3191 = vpop.f32.mrb[0].mxu0
  %v3192 = vpop.f32.mrb[0].mxu0
  %v3193 = vadd.f32 %v3096, %v3192
  %v3194 = vpop.f32.mrb[0].mxu0
  %3195 = vdwg.mxu0
  %v3196 = vlaneseq
  %v3197 = vand.u32 %v3196, 127
  %vm3198 = vcmp.lt.s32.totalorder %v3197, 10
  %v3199 = vsel %vm3198, %v3134, -inf
  %v3200 = vsel %vm3198, %v3137, -inf
  %v3201 = vsel %vm3198, %v3142, -inf
  %v3202 = vsel %vm3198, %v3145, -inf
  %v3203 = vsel %vm3198, %v3150, -inf
  %v3204 = vsel %vm3198, %v3153, -inf
  %v3205 = vsel %vm3198, %v3158, -inf
  %v3206 = vsel %vm3198, %v3161, -inf
  %v3207 = vsel %vm3198, %v3166, -inf
  %v3208 = vsel %vm3198, %v3169, -inf
  %v3209 = vsel %vm3198, %v3174, -inf
  %v3210 = vsel %vm3198, %v3177, -inf
  %v3211 = vsel %vm3198, %v3182, -inf
  %v3212 = vsel %vm3198, %v3185, -inf
  %v3213 = vsel %vm3198, %v3190, -inf
  %v3214 = vsel %vm3198, %v3193, -inf
  %3215 = vmax.xlane.f32.xlu0 %v3199
  %v3216 = vpop.xlane.xlu0 %3215
  %3217 = vmax.xlane.f32.xlu0 %v3200
  %v3218 = vpop.xlane.xlu0 %3217
  %3219 = vmax.xlane.f32.xlu0 %v3201
  %v3220 = vpop.xlane.xlu0 %3219
  %3221 = vmax.xlane.f32.xlu0 %v3202
  %v3222 = vpop.xlane.xlu0 %3221
  %3223 = vmax.xlane.f32.xlu0 %v3203
  %v3224 = vpop.xlane.xlu0 %3223
  %3225 = vmax.xlane.f32.xlu0 %v3204
  %v3226 = vpop.xlane.xlu0 %3225
  %3227 = vmax.xlane.f32.xlu0 %v3205
  %v3228 = vpop.xlane.xlu0 %3227
  %3229 = vmax.xlane.f32.xlu0 %v3206
  %v3230 = vpop.xlane.xlu0 %3229
  %3231 = vmax.xlane.f32.xlu0 %v3207
  %v3232 = vpop.xlane.xlu0 %3231
  %3233 = vmax.xlane.f32.xlu0 %v3208
  %v3234 = vpop.xlane.xlu0 %3233
  %3235 = vmax.xlane.f32.xlu0 %v3209
  %v3236 = vpop.xlane.xlu0 %3235
  %3237 = vmax.xlane.f32.xlu0 %v3210
  %v3238 = vpop.xlane.xlu0 %3237
  %3239 = vmax.xlane.f32.xlu0 %v3211
  %v3240 = vpop.xlane.xlu0 %3239
  %3241 = vmax.xlane.f32.xlu0 %v3212
  %v3242 = vpop.xlane.xlu0 %3241
  %3243 = vmax.xlane.f32.xlu0 %v3213
  %v3244 = vpop.xlane.xlu0 %3243
  %3245 = vmax.xlane.f32.xlu0 %v3214
  %v3246 = vpop.xlane.xlu0 %3245
  %v3247 = vsub.f32 %v3199, %v3216
  %v3248 = vsub.f32 %v3200, %v3218
  %v3249 = vsub.f32 %v3201, %v3220
  %v3250 = vsub.f32 %v3202, %v3222
  %v3251 = vsub.f32 %v3203, %v3224
  %v3252 = vsub.f32 %v3204, %v3226
  %v3253 = vsub.f32 %v3205, %v3228
  %v3254 = vsub.f32 %v3206, %v3230
  %v3255 = vsub.f32 %v3207, %v3232
  %v3256 = vsub.f32 %v3208, %v3234
  %v3257 = vsub.f32 %v3209, %v3236
  %v3258 = vsub.f32 %v3210, %v3238
  %v3259 = vsub.f32 %v3211, %v3240
  %v3260 = vsub.f32 %v3212, %v3242
  %v3261 = vsub.f32 %v3213, %v3244
  %v3262 = vsub.f32 %v3214, %v3246
  %v3263 = vmul.f32 %v3247, 1.442695
  %v3264 = vpow.pop %v3263
  %v3265 = vmul.f32 %v3248, 1.442695
  %v3266 = vpow.pop %v3265
  %v3267 = vmul.f32 %v3249, 1.442695
  %v3268 = vpow.pop %v3267
  %v3269 = vmul.f32 %v3250, 1.442695
  %v3270 = vpow.pop %v3269
  %v3271 = vmul.f32 %v3251, 1.442695
  %v3272 = vpow.pop %v3271
  %v3273 = vmul.f32 %v3252, 1.442695
  %v3274 = vpow.pop %v3273
  %v3275 = vmul.f32 %v3253, 1.442695
  %v3276 = vpow.pop %v3275
  %v3277 = vmul.f32 %v3254, 1.442695
  %v3278 = vpow.pop %v3277
  %v3279 = vmul.f32 %v3255, 1.442695
  %v3280 = vpow.pop %v3279
  %v3281 = vmul.f32 %v3256, 1.442695
  %v3282 = vpow.pop %v3281
  %v3283 = vmul.f32 %v3257, 1.442695
  %v3284 = vpow.pop %v3283
  %v3285 = vmul.f32 %v3258, 1.442695
  %v3286 = vpow.pop %v3285
  %v3287 = vmul.f32 %v3259, 1.442695
  %v3288 = vpow.pop %v3287
  %v3289 = vmul.f32 %v3260, 1.442695
  %v3290 = vpow.pop %v3289
  %v3291 = vmul.f32 %v3261, 1.442695
  %v3292 = vpow.pop %v3291
  %v3293 = vmul.f32 %v3262, 1.442695
  %v3294 = vpow.pop %v3293
  %3295 = vadd.xlane.f32.xlu0 %v3264
  %v3296 = vpop.xlane.xlu0 %3295
  %3297 = vadd.xlane.f32.xlu0 %v3266
  %v3298 = vpop.xlane.xlu0 %3297
  %3299 = vadd.xlane.f32.xlu0 %v3268
  %v3300 = vpop.xlane.xlu0 %3299
  %3301 = vadd.xlane.f32.xlu0 %v3270
  %v3302 = vpop.xlane.xlu0 %3301
  %3303 = vadd.xlane.f32.xlu0 %v3272
  %v3304 = vpop.xlane.xlu0 %3303
  %3305 = vadd.xlane.f32.xlu0 %v3274
  %v3306 = vpop.xlane.xlu0 %3305
  %3307 = vadd.xlane.f32.xlu0 %v3276
  %v3308 = vpop.xlane.xlu0 %3307
  %3309 = vadd.xlane.f32.xlu0 %v3278
  %v3310 = vpop.xlane.xlu0 %3309
  %3311 = vadd.xlane.f32.xlu0 %v3280
  %v3312 = vpop.xlane.xlu0 %3311
  %3313 = vadd.xlane.f32.xlu0 %v3282
  %v3314 = vpop.xlane.xlu0 %3313
  %3315 = vadd.xlane.f32.xlu0 %v3284
  %v3316 = vpop.xlane.xlu0 %3315
  %3317 = vadd.xlane.f32.xlu0 %v3286
  %v3318 = vpop.xlane.xlu0 %3317
  %3319 = vadd.xlane.f32.xlu0 %v3288
  %v3320 = vpop.xlane.xlu0 %3319
  %3321 = vadd.xlane.f32.xlu0 %v3290
  %v3322 = vpop.xlane.xlu0 %3321
  %3323 = vadd.xlane.f32.xlu0 %v3292
  %v3324 = vpop.xlane.xlu0 %3323
  %3325 = vadd.xlane.f32.xlu0 %v3294
  %v3326 = vpop.xlane.xlu0 %3325
  %v3327 = vlog2.pop %v3296
  %v3328 = vmul.f32 %v3327, 0.6931472
  %v3329 = vlog2.pop %v3298
  %v3330 = vmul.f32 %v3329, 0.6931472
  %v3331 = vlog2.pop %v3300
  %v3332 = vmul.f32 %v3331, 0.6931472
  %v3333 = vlog2.pop %v3302
  %v3334 = vmul.f32 %v3333, 0.6931472
  %v3335 = vlog2.pop %v3304
  %v3336 = vmul.f32 %v3335, 0.6931472
  %v3337 = vlog2.pop %v3306
  %v3338 = vmul.f32 %v3337, 0.6931472
  %v3339 = vlog2.pop %v3308
  %v3340 = vmul.f32 %v3339, 0.6931472
  %v3341 = vlog2.pop %v3310
  %v3342 = vmul.f32 %v3341, 0.6931472
  %v3343 = vlog2.pop %v3312
  %v3344 = vmul.f32 %v3343, 0.6931472
  %v3345 = vlog2.pop %v3314
  %v3346 = vmul.f32 %v3345, 0.6931472
  %v3347 = vlog2.pop %v3316
  %v3348 = vmul.f32 %v3347, 0.6931472
  %v3349 = vlog2.pop %v3318
  %v3350 = vmul.f32 %v3349, 0.6931472
  %v3351 = vlog2.pop %v3320
  %v3352 = vmul.f32 %v3351, 0.6931472
  %v3353 = vlog2.pop %v3322
  %v3354 = vmul.f32 %v3353, 0.6931472
  %v3355 = vlog2.pop %v3324
  %v3356 = vmul.f32 %v3355, 0.6931472
  %v3357 = vlog2.pop %v3326
  %v3358 = vmul.f32 %v3357, 0.6931472
  %v3359 = vsub.f32 %v3247, %v3328
  %v3360 = vsub.f32 %v3248, %v3330
  %v3361 = vsub.f32 %v3249, %v3332
  %v3362 = vsub.f32 %v3250, %v3334
  %v3363 = vsub.f32 %v3251, %v3336
  %v3364 = vsub.f32 %v3252, %v3338
  %v3365 = vsub.f32 %v3253, %v3340
  %v3366 = vsub.f32 %v3254, %v3342
  %v3367 = vsub.f32 %v3255, %v3344
  %v3368 = vsub.f32 %v3256, %v3346
  %v3369 = vsub.f32 %v3257, %v3348
  %v3370 = vsub.f32 %v3258, %v3350
  %v3371 = vsub.f32 %v3259, %v3352
  %v3372 = vsub.f32 %v3260, %v3354
  %v3373 = vsub.f32 %v3261, %v3356
  %v3374 = vsub.f32 %v3262, %v3358
  %3375 = vst [vmem:[%s5] sm:$0xff] %v3359
  %3376 = vst [vmem:[%s5 + $0x8] sm:$0xff] %v3360
  %3377 = vst [vmem:[%s5 + $0x10] sm:$0xff] %v3361
  %3378 = vst [vmem:[%s5 + $0x18] sm:$0xff] %v3362
  %3379 = vst [vmem:[%s5 + $0x20] sm:$0xff] %v3363
  %3380 = vst [vmem:[%s5 + $0x28] sm:$0xff] %v3364
  %3381 = vst [vmem:[%s5 + $0x30] sm:$0xff] %v3365
  %3382 = vst [vmem:[%s5 + $0x38] sm:$0xff] %v3366
  %3383 = vst [vmem:[%s5 + $0x40] sm:$0xff] %v3367
  %3384 = vst [vmem:[%s5 + $0x48] sm:$0xff] %v3368
  %3385 = vst [vmem:[%s5 + $0x50] sm:$0xff] %v3369
  %3386 = vst [vmem:[%s5 + $0x58] sm:$0xff] %v3370
  %3387 = vst [vmem:[%s5 + $0x60] sm:$0xff] %v3371
  %3388 = vst [vmem:[%s5 + $0x68] sm:$0xff] %v3372
  %3389 = vst [vmem:[%s5 + $0x70] sm:$0xff] %v3373
  %3390 = vst [vmem:[%s5 + $0x78] sm:$0xff] %v3374
  // Predicated region
  $region22: #{net_fc_forward.1} parent=0 // pred_check
    _
  $region23: #{net_fc_forward.1} parent=0 // pred_check_branch
    %3392 = sbr.rel (0) target = $region25
  $region24: #{net_fc_forward.1} parent=0 // pred_region
    _
  $region25: #{net_fc_forward.1} parent=0 // pred_fallthru
    _
  // Predicated region
  $region26: #{net_fc_forward.1} parent=0 // pred_check
    _
  $region27: #{net_fc_forward.1} parent=0 // pred_check_branch
    %3394 = sbr.rel (0) target = $region29
  $region28: #{net_fc_forward.1} parent=0 // pred_region
    _
  $region29: #{net_fc_forward.1} parent=0 // pred_fallthru
    _

</llo_original>
